<compile_context>
chip_gen: v7x
topology: tpu7x:2x2x1
jax: 0.10.0
libtpu: 0.0.40
codegen_flags: <defaults>
</compile_context>

<pallas_src>
import functools

import jax
import jax.numpy as jnp
from jax.experimental import pallas as pl
from jax.experimental.pallas import tpu as pltpu

N_CLASSES = 10            # stand-in for opt.n_classes
CODE_DIM = 2              # stand-in for opt.code_dim (latent_layer unused in forward)
BN_EPS = 0.8              # nn.BatchNorm1d(C, 0.8) -> eps=0.8 (intentional, do not "fix")
HEAD_WIDTH = 128          # lane-dense fused head: [adv | aux logits | zero pad]
MXU_DTYPE = jnp.bfloat16  # MXU operand dtype (f32 accumulation everywhere)
ACT_DTYPE = jnp.bfloat16  # storage dtype for tiled-path intermediates h2 / h3
TILE_N = 1024             # batch tile (rows) for the tiled path
FUSED_MAX_ROWS = 1024     # fully-fused single-call path when n_pad <= this
VMEM_LIMIT = 32 * 1024 * 1024   # fits v5e/v6e/v7x scoped VMEM budgets


def _round_up(n, m):
    return ((n + m - 1) // m) * m


# --------------------------------------------------------------------------
# Shared in-kernel helpers
# --------------------------------------------------------------------------
def _bn_fold(mean, var, g, be):
    """Fold BN into one FMA: hn = h*scale + shift."""
    scale = g * jax.lax.rsqrt(var + BN_EPS)
    shift = be - mean * scale
    return scale, shift


def _heads(feat, wh_ref, bh_ref):
    """Fused lane-dense heads: col 0 = sigmoid(adv), cols 1..nC = softmax(aux)."""
    z = jnp.dot(feat.astype(wh_ref.dtype), wh_ref[...],
                preferred_element_type=jnp.float32) + bh_ref[...]
    col = jax.lax.broadcasted_iota(jnp.int32, z.shape, 1)
    sig = 1.0 / (1.0 + jnp.exp(-z))                    # exact divide (parity)
    aux_mask = (col >= 1) & (col <= N_CLASSES)
    logits = jnp.where(aux_mask, z, jnp.float32(-1e30))
    m = jnp.max(logits, axis=1, keepdims=True)
    e = jnp.exp(logits - m)                            # pad cols -> 0
    soft = e / jnp.sum(e, axis=1, keepdims=True)
    return jnp.where(col == 0, sig, soft)              # pad cols stay 0


# --------------------------------------------------------------------------
# Fully fused single-call kernel (whole batch resident in VMEM).
# --------------------------------------------------------------------------
def _fused_kernel(x_ref, w1a_ref, w1b_ref, b1_ref,
                  g1_ref, be1_ref, w2_ref, b2_ref,
                  g2_ref, be2_ref, w3_ref, b3_ref,
                  g3_ref, be3_ref, w4_ref, b4_ref,
                  wh_ref, bh_ref,
                  feat_ref, head_ref,
                  *, n_valid, inv_n, needs_mask):
    x = x_ref[...].astype(jnp.float32)
    # Linear(2,64) as two VPU FMAs (K=2 would waste >98% of the MXU).
    h1 = jnp.maximum(x[:, 0:1] * w1a_ref[...] + x[:, 1:2] * w1b_ref[...]
                     + b1_ref[...], 0.0)

    if needs_mask:
        row = jax.lax.broadcasted_iota(jnp.int32, (x.shape[0], 1), 0)
        msk = (row < n_valid).astype(jnp.float32)
    else:
        msk = None

    def bn_stats(h):
        hm = h if msk is None else h * msk
        m = jnp.sum(hm, axis=0, keepdims=True) * inv_n
        v = jnp.sum(hm * hm, axis=0, keepdims=True) * inv_n - m * m  # biased var
        return m, v

    m1, v1 = bn_stats(h1)
    s1, t1 = _bn_fold(m1, v1, g1_ref[...], be1_ref[...])
    hn1 = h1 * s1 + t1

    h2 = jnp.maximum(jnp.dot(hn1.astype(w2_ref.dtype), w2_ref[...],
                             preferred_element_type=jnp.float32) + b2_ref[...], 0.0)
    m2, v2 = bn_stats(h2)
    s2, t2 = _bn_fold(m2, v2, g2_ref[...], be2_ref[...])
    hn2 = h2 * s2 + t2

    h3 = jnp.maximum(jnp.dot(hn2.astype(w3_ref.dtype), w3_ref[...],
                             preferred_element_type=jnp.float32) + b3_ref[...], 0.0)
    m3, v3 = bn_stats(h3)
    s3, t3 = _bn_fold(m3, v3, g3_ref[...], be3_ref[...])
    hn3 = h3 * s3 + t3

    feat = jnp.maximum(jnp.dot(hn3.astype(w4_ref.dtype), w4_ref[...],
                               preferred_element_type=jnp.float32) + b4_ref[...], 0.0)
    feat_ref[...] = feat.astype(feat_ref.dtype)
    head_ref[...] = _heads(feat, wh_ref, bh_ref)


# --------------------------------------------------------------------------
# Tiled path, stage 1: Linear(2,64)+ReLU, accumulate BN1 stats (no h1 output).
# --------------------------------------------------------------------------
def _stage1_kernel(x_ref, w1a_ref, w1b_ref, b1_ref,
                   mean_ref, var_ref,
                   *, n_valid, tile, inv_n, needs_mask):
    i = pl.program_id(0)

    @pl.when(i == 0)
    def _init():
        mean_ref[...] = jnp.zeros_like(mean_ref)
        var_ref[...] = jnp.zeros_like(var_ref)

    x = x_ref[...].astype(jnp.float32)
    h = jnp.maximum(x[:, 0:1] * w1a_ref[...] + x[:, 1:2] * w1b_ref[...]
                    + b1_ref[...], 0.0)
    if needs_mask:
        row = i * tile + jax.lax.broadcasted_iota(jnp.int32, (tile, 1), 0)
        h = h * (row < n_valid).astype(jnp.float32)
    mean_ref[...] += jnp.sum(h, axis=0, keepdims=True)        # running sum
    var_ref[...] += jnp.sum(h * h, axis=0, keepdims=True)     # running sumsq

    @pl.when(i == pl.num_programs(0) - 1)
    def _finalize():
        m = mean_ref[...] * inv_n
        v = var_ref[...] * inv_n - m * m
        mean_ref[...] = m
        var_ref[...] = v


# --------------------------------------------------------------------------
# Tiled path, stage 2: recompute h1 from x, BN1 -> Linear(64,128)+ReLU,
# store h2 (bf16), accumulate BN2 stats.
# --------------------------------------------------------------------------
def _stage2_kernel(x_ref, w1a_ref, w1b_ref, b1_ref,
                   mean1_ref, var1_ref, g1_ref, be1_ref,
                   w2_ref, b2_ref,
                   h2_ref, mean_ref, var_ref,
                   *, n_valid, tile, inv_n, needs_mask):
    i = pl.program_id(0)

    @pl.when(i == 0)
    def _init():
        mean_ref[...] = jnp.zeros_like(mean_ref)
        var_ref[...] = jnp.zeros_like(var_ref)

    x = x_ref[...].astype(jnp.float32)
    h1 = jnp.maximum(x[:, 0:1] * w1a_ref[...] + x[:, 1:2] * w1b_ref[...]
                     + b1_ref[...], 0.0)
    s1, t1 = _bn_fold(mean1_ref[...], var1_ref[...], g1_ref[...], be1_ref[...])
    hn1 = h1 * s1 + t1

    h2 = jnp.maximum(jnp.dot(hn1.astype(w2_ref.dtype), w2_ref[...],
                             preferred_element_type=jnp.float32) + b2_ref[...], 0.0)
    h2_ref[...] = h2.astype(h2_ref.dtype)

    if needs_mask:
        row = i * tile + jax.lax.broadcasted_iota(jnp.int32, (tile, 1), 0)
        h2 = h2 * (row < n_valid).astype(jnp.float32)
    mean_ref[...] += jnp.sum(h2, axis=0, keepdims=True)
    var_ref[...] += jnp.sum(h2 * h2, axis=0, keepdims=True)

    @pl.when(i == pl.num_programs(0) - 1)
    def _finalize():
        m = mean_ref[...] * inv_n
        v = var_ref[...] * inv_n - m * m
        mean_ref[...] = m
        var_ref[...] = v


# --------------------------------------------------------------------------
# Tiled path, stage 3: BN2 -> Linear(128,256)+ReLU, store h3 (bf16),
# accumulate BN3 stats.
# --------------------------------------------------------------------------
def _stage3_kernel(h_ref, mean_in_ref, var_in_ref, g_ref, be_ref,
                   w_ref, b_ref,
                   hout_ref, mean_ref, var_ref,
                   *, n_valid, tile, inv_n, needs_mask):
    i = pl.program_id(0)

    @pl.when(i == 0)
    def _init():
        mean_ref[...] = jnp.zeros_like(mean_ref)
        var_ref[...] = jnp.zeros_like(var_ref)

    h = h_ref[...].astype(jnp.float32)
    s, t = _bn_fold(mean_in_ref[...], var_in_ref[...], g_ref[...], be_ref[...])
    hn = h * s + t

    hout = jnp.maximum(jnp.dot(hn.astype(w_ref.dtype), w_ref[...],
                               preferred_element_type=jnp.float32) + b_ref[...], 0.0)
    hout_ref[...] = hout.astype(hout_ref.dtype)

    if needs_mask:
        row = i * tile + jax.lax.broadcasted_iota(jnp.int32, (tile, 1), 0)
        hout = hout * (row < n_valid).astype(jnp.float32)
    mean_ref[...] += jnp.sum(hout, axis=0, keepdims=True)
    var_ref[...] += jnp.sum(hout * hout, axis=0, keepdims=True)

    @pl.when(i == pl.num_programs(0) - 1)
    def _finalize():
        m = mean_ref[...] * inv_n
        v = var_ref[...] * inv_n - m * m
        mean_ref[...] = m
        var_ref[...] = v


# --------------------------------------------------------------------------
# Tiled path, stage 4: BN3 -> Linear(256,512)+ReLU => feature_out,
# fused lane-dense heads.
# --------------------------------------------------------------------------
def _stage4_kernel(h_ref, mean_in_ref, var_in_ref, g_ref, be_ref,
                   w4_ref, b4_ref, wh_ref, bh_ref,
                   feat_ref, head_ref):
    h = h_ref[...].astype(jnp.float32)
    s, t = _bn_fold(mean_in_ref[...], var_in_ref[...], g_ref[...], be_ref[...])
    hn = h * s + t

    feat = jnp.maximum(jnp.dot(hn.astype(w4_ref.dtype), w4_ref[...],
                               preferred_element_type=jnp.float32) + b4_ref[...], 0.0)
    feat_ref[...] = feat.astype(feat_ref.dtype)
    head_ref[...] = _heads(feat, wh_ref, bh_ref)


# --------------------------------------------------------------------------
# Wrapper
# --------------------------------------------------------------------------
def discriminator_forward(x, params, tile_n=TILE_N, force_tiled=False):
    """x: (N, 2) float32. Returns (validity (N,1), label (N,nC), feature_out (N,512))."""
    f32 = jnp.float32
    n = x.shape[0]
    inv_n = 1.0 / float(n)
    x_f = x.astype(f32)

    n_pad8 = _round_up(max(n, 8), 8)

    # ---------------- Fused single-call fast path -----------------------------
    if n_pad8 <= FUSED_MAX_ROWS and not force_tiled:
        n_pad = n_pad8
        x_p = jnp.pad(x_f, ((0, n_pad - n), (0, 0)))

        def spec(shape):
            return pl.BlockSpec(shape, lambda i: (0, 0))

        kernel = functools.partial(_fused_kernel, n_valid=n, inv_n=inv_n,
                                   needs_mask=(n != n_pad))
        feat, head = pl.pallas_call(
            kernel,
            grid_spec=pltpu.PrefetchScalarGridSpec(
                num_scalar_prefetch=0, grid=(1,),
                in_specs=[spec((n_pad, 2)),
                          spec((1, 64)), spec((1, 64)), spec((1, 64)),
                          spec((1, 64)), spec((1, 64)), spec((64, 128)), spec((1, 128)),
                          spec((1, 128)), spec((1, 128)), spec((128, 256)), spec((1, 256)),
                          spec((1, 256)), spec((1, 256)), spec((256, 512)), spec((1, 512)),
                          spec((512, HEAD_WIDTH)), spec((1, HEAD_WIDTH))],
                out_specs=[spec((n_pad, 512)), spec((n_pad, HEAD_WIDTH))],
            ),
            out_shape=(jax.ShapeDtypeStruct((n_pad, 512), f32),
                       jax.ShapeDtypeStruct((n_pad, HEAD_WIDTH), f32)),
            compiler_params=pltpu.CompilerParams(
                dimension_semantics=("arbitrary",),
                vmem_limit_bytes=VMEM_LIMIT),
        )(x_p, params["w1_row0"], params["w1_row1"], params["b1"],
          params["g1"], params["be1"], params["w2"], params["b2"],
          params["g2"], params["be2"], params["w3"], params["b3"],
          params["g3"], params["be3"], params["w4"], params["b4"],
          params["w_head"], params["b_head"])

        return head[:n, 0:1], head[:n, 1:1 + N_CLASSES], feat[:n]

    # ---------------- Tiled path (large batches) -------------------------------
    tile = _round_up(tile_n, 16)          # 16: bf16 sublane packing for h2/h3
    n_pad = _round_up(n_pad8, tile)
    grid = (n_pad // tile,)
    needs_mask = (n != n_pad)
    x_p = jnp.pad(x_f, ((0, n_pad - n), (0, 0)))

    def tiled(c):      # batch-tiled operand
        return pl.BlockSpec((tile, c), lambda i: (i, 0))

    def full(shape):   # resident operand (weights / biases / BN stats)
        return pl.BlockSpec(shape, lambda i: (0, 0))

    cp_stats = pltpu.CompilerParams(dimension_semantics=("arbitrary",),
                                    vmem_limit_bytes=VMEM_LIMIT)
    # TODO(synk): on v7x an explicit CORE_PARALLEL outer axis (per-core partial
    # sums + 2-way reduce) would let the stats stages use both TensorCores.
    cp_par = pltpu.CompilerParams(dimension_semantics=("parallel",),
                                  vmem_limit_bytes=VMEM_LIMIT)

    common = dict(n_valid=n, tile=tile, inv_n=inv_n, needs_mask=needs_mask)

    # ---- Stage 1: Linear(2,64)+ReLU, BN1 stats only (no h1 HBM round trip) ----
    mean1, var1 = pl.pallas_call(
        functools.partial(_stage1_kernel, **common),
        grid_spec=pltpu.PrefetchScalarGridSpec(
            num_scalar_prefetch=0, grid=grid,
            in_specs=[tiled(2), full((1, 64)), full((1, 64)), full((1, 64))],
            out_specs=[full((1, 64)), full((1, 64))],
        ),
        out_shape=(jax.ShapeDtypeStruct((1, 64), f32),
                   jax.ShapeDtypeStruct((1, 64), f32)),
        compiler_params=cp_stats,
    )(x_p, params["w1_row0"], params["w1_row1"], params["b1"])

    # ---- Stage 2: recompute h1, BN1 -> Linear(64,128)+ReLU, BN2 stats ---------
    h2, mean2, var2 = pl.pallas_call(
        functools.partial(_stage2_kernel, **common),
        grid_spec=pltpu.PrefetchScalarGridSpec(
            num_scalar_prefetch=0, grid=grid,
            in_specs=[tiled(2), full((1, 64)), full((1, 64)), full((1, 64)),
                      full((1, 64)), full((1, 64)), full((1, 64)), full((1, 64)),
                      full((64, 128)), full((1, 128))],
            out_specs=[tiled(128), full((1, 128)), full((1, 128))],
        ),
        out_shape=(jax.ShapeDtypeStruct((n_pad, 128), ACT_DTYPE),
                   jax.ShapeDtypeStruct((1, 128), f32),
                   jax.ShapeDtypeStruct((1, 128), f32)),
        compiler_params=cp_stats,
    )(x_p, params["w1_row0"], params["w1_row1"], params["b1"],
      mean1, var1, params["g1"], params["be1"], params["w2"], params["b2"])

    # ---- Stage 3: BN2 -> Linear(128,256)+ReLU, BN3 stats ----------------------
    h3, mean3, var3 = pl.pallas_call(
        functools.partial(_stage3_kernel, **common),
        grid_spec=pltpu.PrefetchScalarGridSpec(
            num_scalar_prefetch=0, grid=grid,
            in_specs=[tiled(128),
                      full((1, 128)), full((1, 128)), full((1, 128)), full((1, 128)),
                      full((128, 256)), full((1, 256))],
            out_specs=[tiled(256), full((1, 256)), full((1, 256))],
        ),
        out_shape=(jax.ShapeDtypeStruct((n_pad, 256), ACT_DTYPE),
                   jax.ShapeDtypeStruct((1, 256), f32),
                   jax.ShapeDtypeStruct((1, 256), f32)),
        compiler_params=cp_stats,
    )(h2, mean2, var2, params["g2"], params["be2"], params["w3"], params["b3"])

    # ---- Stage 4: BN3 -> Linear(256,512)+ReLU -> fused lane-dense heads -------
    feat, head = pl.pallas_call(
        _stage4_kernel,
        grid_spec=pltpu.PrefetchScalarGridSpec(
            num_scalar_prefetch=0, grid=grid,
            in_specs=[tiled(256),
                      full((1, 256)), full((1, 256)), full((1, 256)), full((1, 256)),
                      full((256, 512)), full((1, 512)),
                      full((512, HEAD_WIDTH)), full((1, HEAD_WIDTH))],
            out_specs=[tiled(512), tiled(HEAD_WIDTH)],
        ),
        out_shape=(jax.ShapeDtypeStruct((n_pad, 512), f32),
                   jax.ShapeDtypeStruct((n_pad, HEAD_WIDTH), f32)),
        compiler_params=cp_par,
    )(h3, mean3, var3, params["g3"], params["be3"],
      params["w4"], params["b4"], params["w_head"], params["b_head"])

    validity = head[:n, 0:1]
    label = head[:n, 1:1 + N_CLASSES]
    feature_out = feat[:n]
    return validity, label, feature_out


# --------------------------------------------------------------------------
# Parameter init mirroring PyTorch nn.Linear defaults (U(-1/sqrt(fan_in), +)).
# --------------------------------------------------------------------------
def init_params(key):
    ks = jax.random.split(key, 6)

    def lin(k, fi, fo, dtype=jnp.float32):
        kw, kb = jax.random.split(k)
        bound = 1.0 / float(fi) ** 0.5
        w = jax.random.uniform(kw, (fi, fo), jnp.float32, -bound, bound)
        b = jax.random.uniform(kb, (1, fo), jnp.float32, -bound, bound)
        return w.astype(dtype), b

    p = {}
    w1, p["b1"] = lin(ks[0], 2, 64)                    # first layer stays f32 (VPU path)
    p["w1_row0"] = w1[0:1, :]
    p["w1_row1"] = w1[1:2, :]
    p["w2"], p["b2"] = lin(ks[1], 64, 128, MXU_DTYPE)
    p["w3"], p["b3"] = lin(ks[2], 128, 256, MXU_DTYPE)
    p["w4"], p["b4"] = lin(ks[3], 256, 512, MXU_DTYPE)
    for i, c in zip((1, 2, 3), (64, 128, 256)):
        p[f"g{i}"] = jnp.ones((1, c), jnp.float32)
        p[f"be{i}"] = jnp.zeros((1, c), jnp.float32)

    # Fused lane-dense head: columns = [adv | N_CLASSES aux logits | zero pad].
    wadv, badv = lin(ks[4], 512, 1)
    waux, baux = lin(ks[5], 512, N_CLASSES)
    w_head = jnp.zeros((512, HEAD_WIDTH), jnp.float32)
    w_head = w_head.at[:, 0:1].set(wadv).at[:, 1:1 + N_CLASSES].set(waux)
    b_head = jnp.zeros((1, HEAD_WIDTH), jnp.float32)
    b_head = b_head.at[:, 0:1].set(badv).at[:, 1:1 + N_CLASSES].set(baux)
    p["w_head"] = w_head.astype(MXU_DTYPE)
    p["b_head"] = b_head
    # TODO(synk): latent_layer (Linear(512, code_dim)) is defined in __init__ but
    # never used in forward(), so its weights are intentionally not materialized.
    return p


if __name__ == "__main__":
    key = jax.random.PRNGKey(0)
    k_param, k_x, k_x2 = jax.random.split(key, 3)
    params = init_params(k_param)

    # Fused single-call path (typical small GAN batch).
    batch = 8
    x = jax.random.normal(k_x, (batch, 2), jnp.float32)
    validity, label, feature_out = discriminator_forward(x, params)
    jax.block_until_ready((validity, label, feature_out))

    assert validity.shape == (batch, 1)
    assert label.shape == (batch, N_CLASSES)
    assert feature_out.shape == (batch, 512)
    assert bool(jnp.all(jnp.isfinite(validity)))
    assert bool(jnp.all(jnp.isfinite(label)))
    assert bool(jnp.all(jnp.isfinite(feature_out)))

    # Tiled (cross-tile BN stats) path sanity check with a deliberately small tile.
    batch2 = 520
    x2 = jax.random.normal(k_x2, (batch2, 2), jnp.float32)
    v2, l2, f2 = discriminator_forward(x2, params, tile_n=256, force_tiled=True)
    jax.block_until_ready((v2, l2, f2))
    assert v2.shape == (batch2, 1) and l2.shape == (batch2, N_CLASSES)
    assert f2.shape == (batch2, 512)
    assert bool(jnp.all(jnp.isfinite(v2)))
    assert bool(jnp.all(jnp.isfinite(l2)))

    print("KERNEL_OK")
</pallas_src>

<mosaic_0001>
module attributes {stable_mosaic.version = 11 : i64} {
  func.func @_fused_kernel(%arg0: i32, %arg1: memref<8x2xf32, #tpu.memory_space<vmem>>, %arg2: memref<1x64xf32, #tpu.memory_space<vmem>>, %arg3: memref<1x64xf32, #tpu.memory_space<vmem>>, %arg4: memref<1x64xf32, #tpu.memory_space<vmem>>, %arg5: memref<1x64xf32, #tpu.memory_space<vmem>>, %arg6: memref<1x64xf32, #tpu.memory_space<vmem>>, %arg7: memref<64x128xbf16, #tpu.memory_space<vmem>>, %arg8: memref<1x128xf32, #tpu.memory_space<vmem>>, %arg9: memref<1x128xf32, #tpu.memory_space<vmem>>, %arg10: memref<1x128xf32, #tpu.memory_space<vmem>>, %arg11: memref<128x256xbf16, #tpu.memory_space<vmem>>, %arg12: memref<1x256xf32, #tpu.memory_space<vmem>>, %arg13: memref<1x256xf32, #tpu.memory_space<vmem>>, %arg14: memref<1x256xf32, #tpu.memory_space<vmem>>, %arg15: memref<256x512xbf16, #tpu.memory_space<vmem>>, %arg16: memref<1x512xf32, #tpu.memory_space<vmem>>, %arg17: memref<512x128xbf16, #tpu.memory_space<vmem>>, %arg18: memref<1x128xf32, #tpu.memory_space<vmem>>, %arg19: memref<8x512xf32, #tpu.memory_space<vmem>>, %arg20: memref<8x128xf32, #tpu.memory_space<vmem>>) attributes {dimension_semantics = [#tpu.dimension_semantics<arbitrary>], iteration_bounds = array<i64: 1>, scalar_prefetch = 0 : i64, scratch_operands = 0 : i64, tpu.core_type = #tpu.core_type<tc>, window_params = [{pipeline_mode = #tpu.pipeline_mode<synchronous>, transform_indices = @transform_0, window_bounds = array<i64: 8, 2>}, {pipeline_mode = #tpu.pipeline_mode<synchronous>, transform_indices = @transform_1, window_bounds = array<i64: 1, 64>}, {pipeline_mode = #tpu.pipeline_mode<synchronous>, transform_indices = @transform_2, window_bounds = array<i64: 1, 64>}, {pipeline_mode = #tpu.pipeline_mode<synchronous>, transform_indices = @transform_3, window_bounds = array<i64: 1, 64>}, {pipeline_mode = #tpu.pipeline_mode<synchronous>, transform_indices = @transform_4, window_bounds = array<i64: 1, 64>}, {pipeline_mode = #tpu.pipeline_mode<synchronous>, transform_indices = @transform_5, window_bounds = array<i64: 1, 64>}, {pipeline_mode = #tpu.pipeline_mode<synchronous>, transform_indices = @transform_6, window_bounds = array<i64: 64, 128>}, {pipeline_mode = #tpu.pipeline_mode<synchronous>, transform_indices = @transform_7, window_bounds = array<i64: 1, 128>}, {pipeline_mode = #tpu.pipeline_mode<synchronous>, transform_indices = @transform_8, window_bounds = array<i64: 1, 128>}, {pipeline_mode = #tpu.pipeline_mode<synchronous>, transform_indices = @transform_9, window_bounds = array<i64: 1, 128>}, {pipeline_mode = #tpu.pipeline_mode<synchronous>, transform_indices = @transform_10, window_bounds = array<i64: 128, 256>}, {pipeline_mode = #tpu.pipeline_mode<synchronous>, transform_indices = @transform_11, window_bounds = array<i64: 1, 256>}, {pipeline_mode = #tpu.pipeline_mode<synchronous>, transform_indices = @transform_12, window_bounds = array<i64: 1, 256>}, {pipeline_mode = #tpu.pipeline_mode<synchronous>, transform_indices = @transform_13, window_bounds = array<i64: 1, 256>}, {pipeline_mode = #tpu.pipeline_mode<synchronous>, transform_indices = @transform_14, window_bounds = array<i64: 256, 512>}, {pipeline_mode = #tpu.pipeline_mode<synchronous>, transform_indices = @transform_15, window_bounds = array<i64: 1, 512>}, {pipeline_mode = #tpu.pipeline_mode<synchronous>, transform_indices = @transform_16, window_bounds = array<i64: 512, 128>}, {pipeline_mode = #tpu.pipeline_mode<synchronous>, transform_indices = @transform_17, window_bounds = array<i64: 1, 128>}, {pipeline_mode = #tpu.pipeline_mode<synchronous>, transform_indices = @transform_18, window_bounds = array<i64: 8, 512>}, {pipeline_mode = #tpu.pipeline_mode<synchronous>, transform_indices = @transform_19, window_bounds = array<i64: 8, 128>}]} {
    %c0 = arith.constant 0 : index
    %c0_0 = arith.constant 0 : index
    %0 = vector.load %arg1[%c0, %c0_0] : memref<8x2xf32, #tpu.memory_space<vmem>>, vector<8x2xf32>
    %1 = vector.extract_strided_slice %0 {offsets = [0, 0], sizes = [8, 1], strides = [1, 1]} : vector<8x2xf32> to vector<8x1xf32>
    %c0_1 = arith.constant 0 : index
    %c0_2 = arith.constant 0 : index
    %2 = vector.load %arg2[%c0_1, %c0_2] : memref<1x64xf32, #tpu.memory_space<vmem>>, vector<1x64xf32>
    %3 = vector.broadcast %1 : vector<8x1xf32> to vector<8x64xf32>
    %4 = vector.broadcast %2 : vector<1x64xf32> to vector<8x64xf32>
    %5 = arith.mulf %3, %4 : vector<8x64xf32>
    %6 = vector.extract_strided_slice %0 {offsets = [0, 1], sizes = [8, 1], strides = [1, 1]} : vector<8x2xf32> to vector<8x1xf32>
    %c0_3 = arith.constant 0 : index
    %c0_4 = arith.constant 0 : index
    %7 = vector.load %arg3[%c0_3, %c0_4] : memref<1x64xf32, #tpu.memory_space<vmem>>, vector<1x64xf32>
    %8 = vector.broadcast %6 : vector<8x1xf32> to vector<8x64xf32>
    %9 = vector.broadcast %7 : vector<1x64xf32> to vector<8x64xf32>
    %10 = arith.mulf %8, %9 : vector<8x64xf32>
    %11 = arith.addf %5, %10 : vector<8x64xf32>
    %c0_5 = arith.constant 0 : index
    %c0_6 = arith.constant 0 : index
    %12 = vector.load %arg4[%c0_5, %c0_6] : memref<1x64xf32, #tpu.memory_space<vmem>>, vector<1x64xf32>
    %13 = vector.broadcast %12 : vector<1x64xf32> to vector<8x64xf32>
    %14 = arith.addf %11, %13 : vector<8x64xf32>
    %cst = arith.constant 0.000000e+00 : f32
    %15 = vector.broadcast %cst : f32 to vector<8x64xf32>
    %16 = arith.maximumf %14, %15 : vector<8x64xf32>
    %cst_7 = arith.constant dense<0.000000e+00> : vector<64xf32>
    %17 = vector.multi_reduction <add>, %16, %cst_7 [0] : vector<8x64xf32> to vector<64xf32>
    %18 = vector.shape_cast %17 : vector<64xf32> to vector<1x64xf32>
    %cst_8 = arith.constant 1.250000e-01 : f32
    %19 = vector.broadcast %cst_8 : f32 to vector<1x64xf32>
    %20 = arith.mulf %18, %19 : vector<1x64xf32>
    %21 = arith.mulf %16, %16 : vector<8x64xf32>
    %cst_9 = arith.constant dense<0.000000e+00> : vector<64xf32>
    %22 = vector.multi_reduction <add>, %21, %cst_9 [0] : vector<8x64xf32> to vector<64xf32>
    %23 = vector.shape_cast %22 : vector<64xf32> to vector<1x64xf32>
    %cst_10 = arith.constant 1.250000e-01 : f32
    %24 = vector.broadcast %cst_10 : f32 to vector<1x64xf32>
    %25 = arith.mulf %23, %24 : vector<1x64xf32>
    %26 = arith.mulf %20, %20 : vector<1x64xf32>
    %27 = arith.subf %25, %26 : vector<1x64xf32>
    %c0_11 = arith.constant 0 : index
    %c0_12 = arith.constant 0 : index
    %28 = vector.load %arg5[%c0_11, %c0_12] : memref<1x64xf32, #tpu.memory_space<vmem>>, vector<1x64xf32>
    %c0_13 = arith.constant 0 : index
    %c0_14 = arith.constant 0 : index
    %29 = vector.load %arg6[%c0_13, %c0_14] : memref<1x64xf32, #tpu.memory_space<vmem>>, vector<1x64xf32>
    %cst_15 = arith.constant 8.000000e-01 : f32
    %30 = vector.broadcast %cst_15 : f32 to vector<1x64xf32>
    %31 = arith.addf %27, %30 : vector<1x64xf32>
    %32 = math.rsqrt %31 : vector<1x64xf32>
    %33 = arith.mulf %28, %32 : vector<1x64xf32>
    %34 = arith.mulf %20, %33 : vector<1x64xf32>
    %35 = arith.subf %29, %34 : vector<1x64xf32>
    %36 = vector.broadcast %33 : vector<1x64xf32> to vector<8x64xf32>
    %37 = arith.mulf %16, %36 : vector<8x64xf32>
    %38 = vector.broadcast %35 : vector<1x64xf32> to vector<8x64xf32>
    %39 = arith.addf %37, %38 : vector<8x64xf32>
    %40 = arith.truncf %39 : vector<8x64xf32> to vector<8x64xbf16>
    %c0_16 = arith.constant 0 : index
    %c0_17 = arith.constant 0 : index
    %41 = vector.load %arg7[%c0_16, %c0_17] : memref<64x128xbf16, #tpu.memory_space<vmem>>, vector<64x128xbf16>
    %cst_18 = arith.constant dense<0.000000e+00> : vector<8x128xf32>
    %42 = tpu.matmul %40, %41, %cst_18 {dimension_numbers = #tpu.dot_dimension_numbers<[1], [0], [0], [1], [0, 0, 1, 1], [], []>} : vector<8x64xbf16>, vector<64x128xbf16>, vector<8x128xf32> -> vector<8x128xf32>
    %c0_19 = arith.constant 0 : index
    %c0_20 = arith.constant 0 : index
    %43 = vector.load %arg8[%c0_19, %c0_20] : memref<1x128xf32, #tpu.memory_space<vmem>>, vector<1x128xf32>
    %44 = vector.broadcast %43 : vector<1x128xf32> to vector<8x128xf32>
    %45 = arith.addf %42, %44 : vector<8x128xf32>
    %cst_21 = arith.constant 0.000000e+00 : f32
    %46 = vector.broadcast %cst_21 : f32 to vector<8x128xf32>
    %47 = arith.maximumf %45, %46 : vector<8x128xf32>
    %cst_22 = arith.constant dense<0.000000e+00> : vector<128xf32>
    %48 = vector.multi_reduction <add>, %47, %cst_22 [0] : vector<8x128xf32> to vector<128xf32>
    %49 = vector.shape_cast %48 : vector<128xf32> to vector<1x128xf32>
    %cst_23 = arith.constant 1.250000e-01 : f32
    %50 = vector.broadcast %cst_23 : f32 to vector<1x128xf32>
    %51 = arith.mulf %49, %50 : vector<1x128xf32>
    %52 = arith.mulf %47, %47 : vector<8x128xf32>
    %cst_24 = arith.constant dense<0.000000e+00> : vector<128xf32>
    %53 = vector.multi_reduction <add>, %52, %cst_24 [0] : vector<8x128xf32> to vector<128xf32>
    %54 = vector.shape_cast %53 : vector<128xf32> to vector<1x128xf32>
    %cst_25 = arith.constant 1.250000e-01 : f32
    %55 = vector.broadcast %cst_25 : f32 to vector<1x128xf32>
    %56 = arith.mulf %54, %55 : vector<1x128xf32>
    %57 = arith.mulf %51, %51 : vector<1x128xf32>
    %58 = arith.subf %56, %57 : vector<1x128xf32>
    %c0_26 = arith.constant 0 : index
    %c0_27 = arith.constant 0 : index
    %59 = vector.load %arg9[%c0_26, %c0_27] : memref<1x128xf32, #tpu.memory_space<vmem>>, vector<1x128xf32>
    %c0_28 = arith.constant 0 : index
    %c0_29 = arith.constant 0 : index
    %60 = vector.load %arg10[%c0_28, %c0_29] : memref<1x128xf32, #tpu.memory_space<vmem>>, vector<1x128xf32>
    %cst_30 = arith.constant 8.000000e-01 : f32
    %61 = vector.broadcast %cst_30 : f32 to vector<1x128xf32>
    %62 = arith.addf %58, %61 : vector<1x128xf32>
    %63 = math.rsqrt %62 : vector<1x128xf32>
    %64 = arith.mulf %59, %63 : vector<1x128xf32>
    %65 = arith.mulf %51, %64 : vector<1x128xf32>
    %66 = arith.subf %60, %65 : vector<1x128xf32>
    %67 = vector.broadcast %64 : vector<1x128xf32> to vector<8x128xf32>
    %68 = arith.mulf %47, %67 : vector<8x128xf32>
    %69 = vector.broadcast %66 : vector<1x128xf32> to vector<8x128xf32>
    %70 = arith.addf %68, %69 : vector<8x128xf32>
    %71 = arith.truncf %70 : vector<8x128xf32> to vector<8x128xbf16>
    %c0_31 = arith.constant 0 : index
    %c0_32 = arith.constant 0 : index
    %72 = vector.load %arg11[%c0_31, %c0_32] : memref<128x256xbf16, #tpu.memory_space<vmem>>, vector<128x256xbf16>
    %cst_33 = arith.constant dense<0.000000e+00> : vector<8x256xf32>
    %73 = tpu.matmul %71, %72, %cst_33 {dimension_numbers = #tpu.dot_dimension_numbers<[1], [0], [0], [1], [0, 0, 1, 1], [], []>} : vector<8x128xbf16>, vector<128x256xbf16>, vector<8x256xf32> -> vector<8x256xf32>
    %c0_34 = arith.constant 0 : index
    %c0_35 = arith.constant 0 : index
    %74 = vector.load %arg12[%c0_34, %c0_35] : memref<1x256xf32, #tpu.memory_space<vmem>>, vector<1x256xf32>
    %75 = vector.broadcast %74 : vector<1x256xf32> to vector<8x256xf32>
    %76 = arith.addf %73, %75 : vector<8x256xf32>
    %cst_36 = arith.constant 0.000000e+00 : f32
    %77 = vector.broadcast %cst_36 : f32 to vector<8x256xf32>
    %78 = arith.maximumf %76, %77 : vector<8x256xf32>
    %cst_37 = arith.constant dense<0.000000e+00> : vector<256xf32>
    %79 = vector.multi_reduction <add>, %78, %cst_37 [0] : vector<8x256xf32> to vector<256xf32>
    %80 = vector.shape_cast %79 : vector<256xf32> to vector<1x256xf32>
    %cst_38 = arith.constant 1.250000e-01 : f32
    %81 = vector.broadcast %cst_38 : f32 to vector<1x256xf32>
    %82 = arith.mulf %80, %81 : vector<1x256xf32>
    %83 = arith.mulf %78, %78 : vector<8x256xf32>
    %cst_39 = arith.constant dense<0.000000e+00> : vector<256xf32>
    %84 = vector.multi_reduction <add>, %83, %cst_39 [0] : vector<8x256xf32> to vector<256xf32>
    %85 = vector.shape_cast %84 : vector<256xf32> to vector<1x256xf32>
    %cst_40 = arith.constant 1.250000e-01 : f32
    %86 = vector.broadcast %cst_40 : f32 to vector<1x256xf32>
    %87 = arith.mulf %85, %86 : vector<1x256xf32>
    %88 = arith.mulf %82, %82 : vector<1x256xf32>
    %89 = arith.subf %87, %88 : vector<1x256xf32>
    %c0_41 = arith.constant 0 : index
    %c0_42 = arith.constant 0 : index
    %90 = vector.load %arg13[%c0_41, %c0_42] : memref<1x256xf32, #tpu.memory_space<vmem>>, vector<1x256xf32>
    %c0_43 = arith.constant 0 : index
    %c0_44 = arith.constant 0 : index
    %91 = vector.load %arg14[%c0_43, %c0_44] : memref<1x256xf32, #tpu.memory_space<vmem>>, vector<1x256xf32>
    %cst_45 = arith.constant 8.000000e-01 : f32
    %92 = vector.broadcast %cst_45 : f32 to vector<1x256xf32>
    %93 = arith.addf %89, %92 : vector<1x256xf32>
    %94 = math.rsqrt %93 : vector<1x256xf32>
    %95 = arith.mulf %90, %94 : vector<1x256xf32>
    %96 = arith.mulf %82, %95 : vector<1x256xf32>
    %97 = arith.subf %91, %96 : vector<1x256xf32>
    %98 = vector.broadcast %95 : vector<1x256xf32> to vector<8x256xf32>
    %99 = arith.mulf %78, %98 : vector<8x256xf32>
    %100 = vector.broadcast %97 : vector<1x256xf32> to vector<8x256xf32>
    %101 = arith.addf %99, %100 : vector<8x256xf32>
    %102 = arith.truncf %101 : vector<8x256xf32> to vector<8x256xbf16>
    %c0_46 = arith.constant 0 : index
    %c0_47 = arith.constant 0 : index
    %103 = vector.load %arg15[%c0_46, %c0_47] : memref<256x512xbf16, #tpu.memory_space<vmem>>, vector<256x512xbf16>
    %cst_48 = arith.constant dense<0.000000e+00> : vector<8x512xf32>
    %104 = tpu.matmul %102, %103, %cst_48 {dimension_numbers = #tpu.dot_dimension_numbers<[1], [0], [0], [1], [0, 0, 1, 1], [], []>} : vector<8x256xbf16>, vector<256x512xbf16>, vector<8x512xf32> -> vector<8x512xf32>
    %c0_49 = arith.constant 0 : index
    %c0_50 = arith.constant 0 : index
    %105 = vector.load %arg16[%c0_49, %c0_50] : memref<1x512xf32, #tpu.memory_space<vmem>>, vector<1x512xf32>
    %106 = vector.broadcast %105 : vector<1x512xf32> to vector<8x512xf32>
    %107 = arith.addf %104, %106 : vector<8x512xf32>
    %cst_51 = arith.constant 0.000000e+00 : f32
    %108 = vector.broadcast %cst_51 : f32 to vector<8x512xf32>
    %109 = arith.maximumf %107, %108 : vector<8x512xf32>
    %c0_52 = arith.constant 0 : index
    %c0_53 = arith.constant 0 : index
    %110 = vector.load %arg19[%c0_52, %c0_53] : memref<8x512xf32, #tpu.memory_space<vmem>>, vector<8x512xf32>
    tpu.vector_store %arg19[%c0_52, %c0_53], %109 {strides = array<i32>} : memref<8x512xf32, #tpu.memory_space<vmem>>, vector<8x512xf32>,
    %111 = arith.truncf %109 : vector<8x512xf32> to vector<8x512xbf16>
    %c0_54 = arith.constant 0 : index
    %c0_55 = arith.constant 0 : index
    %112 = vector.load %arg17[%c0_54, %c0_55] : memref<512x128xbf16, #tpu.memory_space<vmem>>, vector<512x128xbf16>
    %cst_56 = arith.constant dense<0.000000e+00> : vector<8x128xf32>
    %113 = tpu.matmul %111, %112, %cst_56 {dimension_numbers = #tpu.dot_dimension_numbers<[1], [0], [0], [1], [0, 0, 1, 1], [], []>} : vector<8x512xbf16>, vector<512x128xbf16>, vector<8x128xf32> -> vector<8x128xf32>
    %c0_57 = arith.constant 0 : index
    %c0_58 = arith.constant 0 : index
    %114 = vector.load %arg18[%c0_57, %c0_58] : memref<1x128xf32, #tpu.memory_space<vmem>>, vector<1x128xf32>
    %115 = vector.broadcast %114 : vector<1x128xf32> to vector<8x128xf32>
    %116 = arith.addf %113, %115 : vector<8x128xf32>
    %117 = tpu.iota {dimensions = array<i32: 1>} : vector<8x128xi32>
    %cst_59 = arith.constant 0.000000e+00 : f32
    %118 = vector.broadcast %cst_59 : f32 to vector<8x128xf32>
    %119 = arith.subf %118, %116 : vector<8x128xf32>
    %120 = math.exp %119 : vector<8x128xf32>
    %cst_60 = arith.constant 1.000000e+00 : f32
    %121 = vector.broadcast %cst_60 : f32 to vector<8x128xf32>
    %122 = arith.addf %121, %120 : vector<8x128xf32>
    %cst_61 = arith.constant 1.000000e+00 : f32
    %123 = vector.broadcast %cst_61 : f32 to vector<8x128xf32>
    %124 = arith.divf %123, %122 : vector<8x128xf32>
    %c1_i32 = arith.constant 1 : i32
    %125 = vector.broadcast %c1_i32 : i32 to vector<8x128xi32>
    %126 = arith.cmpi sge, %117, %125 : vector<8x128xi32>
    %c10_i32 = arith.constant 10 : i32
    %127 = vector.broadcast %c10_i32 : i32 to vector<8x128xi32>
    %128 = arith.cmpi sle, %117, %127 : vector<8x128xi32>
    %129 = arith.andi %126, %128 : vector<8x128xi1>
    %cst_62 = arith.constant -1.000000e+30 : f32
    %130 = vector.broadcast %cst_62 : f32 to vector<8x128xf32>
    %131 = arith.select %129, %116, %130 : vector<8x128xi1>, vector<8x128xf32>
    %cst_63 = arith.constant dense<0xFF800000> : vector<8xf32>
    %132 = vector.multi_reduction <maximumf>, %131, %cst_63 [1] : vector<8x128xf32> to vector<8xf32>
    %133 = vector.shape_cast %132 : vector<8xf32> to vector<8x1xf32>
    %134 = vector.broadcast %133 : vector<8x1xf32> to vector<8x128xf32>
    %135 = arith.subf %131, %134 : vector<8x128xf32>
    %136 = math.exp %135 : vector<8x128xf32>
    %cst_64 = arith.constant dense<0.000000e+00> : vector<8xf32>
    %137 = vector.multi_reduction <add>, %136, %cst_64 [1] : vector<8x128xf32> to vector<8xf32>
    %138 = vector.shape_cast %137 : vector<8xf32> to vector<8x1xf32>
    %139 = vector.broadcast %138 : vector<8x1xf32> to vector<8x128xf32>
    %140 = arith.divf %136, %139 : vector<8x128xf32>
    %c0_i32 = arith.constant 0 : i32
    %141 = vector.broadcast %c0_i32 : i32 to vector<8x128xi32>
    %142 = arith.cmpi eq, %117, %141 : vector<8x128xi32>
    %143 = arith.select %142, %124, %140 : vector<8x128xi1>, vector<8x128xf32>
    %c0_65 = arith.constant 0 : index
    %c0_66 = arith.constant 0 : index
    %144 = vector.load %arg20[%c0_65, %c0_66] : memref<8x128xf32, #tpu.memory_space<vmem>>, vector<8x128xf32>
    tpu.vector_store %arg20[%c0_65, %c0_66], %143 {strides = array<i32>} : memref<8x128xf32, #tpu.memory_space<vmem>>, vector<8x128xf32>,
    return
  }
  func.func @transform_0(%arg0: i32) -> (i32, i32) {
    %c0_i32 = arith.constant 0 : i32
    %c0_i32_0 = arith.constant 0 : i32
    %c0_i32_1 = arith.constant 0 : i32
    return %c0_i32, %c0_i32_0 : i32, i32
  }
  func.func @transform_1(%arg0: i32) -> (i32, i32) {
    %c0_i32 = arith.constant 0 : i32
    %c0_i32_0 = arith.constant 0 : i32
    %c0_i32_1 = arith.constant 0 : i32
    return %c0_i32, %c0_i32_0 : i32, i32
  }
  func.func @transform_2(%arg0: i32) -> (i32, i32) {
    %c0_i32 = arith.constant 0 : i32
    %c0_i32_0 = arith.constant 0 : i32
    %c0_i32_1 = arith.constant 0 : i32
    return %c0_i32, %c0_i32_0 : i32, i32
  }
  func.func @transform_3(%arg0: i32) -> (i32, i32) {
    %c0_i32 = arith.constant 0 : i32
    %c0_i32_0 = arith.constant 0 : i32
    %c0_i32_1 = arith.constant 0 : i32
    return %c0_i32, %c0_i32_0 : i32, i32
  }
  func.func @transform_4(%arg0: i32) -> (i32, i32) {
    %c0_i32 = arith.constant 0 : i32
    %c0_i32_0 = arith.constant 0 : i32
    %c0_i32_1 = arith.constant 0 : i32
    return %c0_i32, %c0_i32_0 : i32, i32
  }
  func.func @transform_5(%arg0: i32) -> (i32, i32) {
    %c0_i32 = arith.constant 0 : i32
    %c0_i32_0 = arith.constant 0 : i32
    %c0_i32_1 = arith.constant 0 : i32
    return %c0_i32, %c0_i32_0 : i32, i32
  }
  func.func @transform_6(%arg0: i32) -> (i32, i32) {
    %c0_i32 = arith.constant 0 : i32
    %c0_i32_0 = arith.constant 0 : i32
    %c0_i32_1 = arith.constant 0 : i32
    return %c0_i32, %c0_i32_0 : i32, i32
  }
  func.func @transform_7(%arg0: i32) -> (i32, i32) {
    %c0_i32 = arith.constant 0 : i32
    %c0_i32_0 = arith.constant 0 : i32
    %c0_i32_1 = arith.constant 0 : i32
    return %c0_i32, %c0_i32_0 : i32, i32
  }
  func.func @transform_8(%arg0: i32) -> (i32, i32) {
    %c0_i32 = arith.constant 0 : i32
    %c0_i32_0 = arith.constant 0 : i32
    %c0_i32_1 = arith.constant 0 : i32
    return %c0_i32, %c0_i32_0 : i32, i32
  }
  func.func @transform_9(%arg0: i32) -> (i32, i32) {
    %c0_i32 = arith.constant 0 : i32
    %c0_i32_0 = arith.constant 0 : i32
    %c0_i32_1 = arith.constant 0 : i32
    return %c0_i32, %c0_i32_0 : i32, i32
  }
  func.func @transform_10(%arg0: i32) -> (i32, i32) {
    %c0_i32 = arith.constant 0 : i32
    %c0_i32_0 = arith.constant 0 : i32
    %c0_i32_1 = arith.constant 0 : i32
    return %c0_i32, %c0_i32_0 : i32, i32
  }
  func.func @transform_11(%arg0: i32) -> (i32, i32) {
    %c0_i32 = arith.constant 0 : i32
    %c0_i32_0 = arith.constant 0 : i32
    %c0_i32_1 = arith.constant 0 : i32
    return %c0_i32, %c0_i32_0 : i32, i32
  }
  func.func @transform_12(%arg0: i32) -> (i32, i32) {
    %c0_i32 = arith.constant 0 : i32
    %c0_i32_0 = arith.constant 0 : i32
    %c0_i32_1 = arith.constant 0 : i32
    return %c0_i32, %c0_i32_0 : i32, i32
  }
  func.func @transform_13(%arg0: i32) -> (i32, i32) {
    %c0_i32 = arith.constant 0 : i32
    %c0_i32_0 = arith.constant 0 : i32
    %c0_i32_1 = arith.constant 0 : i32
    return %c0_i32, %c0_i32_0 : i32, i32
  }
  func.func @transform_14(%arg0: i32) -> (i32, i32) {
    %c0_i32 = arith.constant 0 : i32
    %c0_i32_0 = arith.constant 0 : i32
    %c0_i32_1 = arith.constant 0 : i32
    return %c0_i32, %c0_i32_0 : i32, i32
  }
  func.func @transform_15(%arg0: i32) -> (i32, i32) {
    %c0_i32 = arith.constant 0 : i32
    %c0_i32_0 = arith.constant 0 : i32
    %c0_i32_1 = arith.constant 0 : i32
    return %c0_i32, %c0_i32_0 : i32, i32
  }
  func.func @transform_16(%arg0: i32) -> (i32, i32) {
    %c0_i32 = arith.constant 0 : i32
    %c0_i32_0 = arith.constant 0 : i32
    %c0_i32_1 = arith.constant 0 : i32
    return %c0_i32, %c0_i32_0 : i32, i32
  }
  func.func @transform_17(%arg0: i32) -> (i32, i32) {
    %c0_i32 = arith.constant 0 : i32
    %c0_i32_0 = arith.constant 0 : i32
    %c0_i32_1 = arith.constant 0 : i32
    return %c0_i32, %c0_i32_0 : i32, i32
  }
  func.func @transform_18(%arg0: i32) -> (i32, i32) {
    %c0_i32 = arith.constant 0 : i32
    %c0_i32_0 = arith.constant 0 : i32
    %c0_i32_1 = arith.constant 0 : i32
    return %c0_i32, %c0_i32_0 : i32, i32
  }
  func.func @transform_19(%arg0: i32) -> (i32, i32) {
    %c0_i32 = arith.constant 0 : i32
    %c0_i32_0 = arith.constant 0 : i32
    %c0_i32_1 = arith.constant 0 : i32
    return %c0_i32, %c0_i32_0 : i32, i32
  }
}

</mosaic_0001>

<llo_original>
// kernel: tpu_custom_call.1
$region0: #{tpu_custom_call.1}
  #allocation0 [shape = 'u32[]', space=smem, size = 0x4, offset = 0x4, fixed_abs, tag = 'smem constant byte address 0x4 - core index']
  #allocation1 [shape = 'u32[144,128]{1,0:T(1,128)}', space=vmem, size = 0x12000, scoped, tag = 'internal scratch']
  %s0 = inlined_call_operand.vmem [shape: f32[8,2], index: 0, kind: input, shape index: {}]
  %s1 = inlined_call_operand.hbm [shape: f32[1,64], index: 1, kind: input, shape index: {}]
  %s2 = inlined_call_operand.hbm [shape: f32[1,64], index: 2, kind: input, shape index: {}]
  %s3 = inlined_call_operand.hbm [shape: f32[1,64], index: 3, kind: input, shape index: {}]
  %s4 = inlined_call_operand.hbm [shape: f32[1,64], index: 4, kind: input, shape index: {}]
  %s5 = inlined_call_operand.hbm [shape: f32[1,64], index: 5, kind: input, shape index: {}]
  %s6 = inlined_call_operand.vmem [shape: bf16[64,128], index: 6, kind: input, shape index: {}]
  %s7 = inlined_call_operand.hbm [shape: f32[1,128], index: 7, kind: input, shape index: {}]
  %s8 = inlined_call_operand.hbm [shape: f32[1,128], index: 8, kind: input, shape index: {}]
  %s9 = inlined_call_operand.vmem [shape: f32[1,128], index: 9, kind: input, shape index: {}]
  %s10 = inlined_call_operand.hbm [shape: bf16[128,256], index: 10, kind: input, shape index: {}]
  %s11 = inlined_call_operand.vmem [shape: f32[1,256], index: 11, kind: input, shape index: {}]
  %s12 = inlined_call_operand.vmem [shape: f32[1,256], index: 12, kind: input, shape index: {}]
  %s13 = inlined_call_operand.vmem [shape: f32[1,256], index: 13, kind: input, shape index: {}]
  %s14 = inlined_call_operand.hbm [shape: bf16[256,512], index: 14, kind: input, shape index: {}]
  %s15 = inlined_call_operand.vmem [shape: f32[1,512], index: 15, kind: input, shape index: {}]
  %s16 = inlined_call_operand.hbm [shape: bf16[512,128], index: 16, kind: input, shape index: {}]
  %s17 = inlined_call_operand.vmem [shape: f32[1,128], index: 17, kind: input, shape index: {}]
  %s18 = inlined_call_operand.hbm [shape: f32[8,512], index: 18, kind: output, shape index: {0}]
  %s19 = inlined_call_operand.hbm [shape: f32[8,128], index: 19, kind: output, shape index: {1}]
  %20 = xla_tuple %s18, %s19
  %s21 = sld [smem:[#allocation0]]
  $region130: #{tpu_custom_call.1} parent=0
    _
  %s23 = ssub.s32 1, %s21
  %s24 = scalar_select 0, %s23, %s21
  $region1: #{tpu_custom_call.1} parent=0
    #allocation2 [shape = 'u8[512]{0}', space=vmem, size = 0x400, scoped, tag = 'input window, operand 1, single buffered']
    #allocation3 [shape = 's32[1]{0}', space=sflag, size = 0x4, scoped, tag = 'scoped memory for tpu_custom_call.1']
    #allocation4 [shape = 's32[1]{0}', space=sflag, size = 0x4, scoped, tag = 'scoped memory for tpu_custom_call.1']
    #allocation5 [shape = 'u8[512]{0}', space=vmem, size = 0x400, scoped, tag = 'input window, operand 2, single buffered']
    #allocation6 [shape = 's32[1]{0}', space=sflag, size = 0x4, scoped, tag = 'scoped memory for tpu_custom_call.1']
    #allocation7 [shape = 'u8[512]{0}', space=vmem, size = 0x400, scoped, tag = 'input window, operand 3, single buffered']
    #allocation8 [shape = 'u8[512]{0}', space=vmem, size = 0x400, scoped, tag = 'input window, operand 4, single buffered']
    #allocation9 [shape = 's32[1]{0}', space=sflag, size = 0x4, scoped, tag = 'scoped memory for tpu_custom_call.1']
    #allocation10 [shape = 'u8[512]{0}', space=vmem, size = 0x400, scoped, tag = 'input window, operand 5, single buffered']
    #allocation11 [shape = 'u8[512]{0}', space=vmem, size = 0x400, scoped, tag = 'input window, operand 7, single buffered']
    #allocation12 [shape = 's32[1]{0}', space=sflag, size = 0x4, scoped, tag = 'scoped memory for tpu_custom_call.1']
    #allocation13 [shape = 'u8[512]{0}', space=vmem, size = 0x400, scoped, tag = 'input window, operand 8, single buffered']
    #allocation14 [shape = 'u8[65536]{0}', space=vmem, size = 0x10000, scoped, tag = 'input window, operand 10, single buffered']
    #allocation15 [shape = 's32[1]{0}', space=sflag, size = 0x4, scoped, tag = 'scoped memory for tpu_custom_call.1']
    #allocation16 [shape = 'u8[262144]{0}', space=vmem, size = 0x40000, scoped, tag = 'input window, operand 14, single buffered']
    #allocation17 [shape = 'u8[131072]{0}', space=vmem, size = 0x20000, scoped, tag = 'input window, operand 16, single buffered']
    #allocation18 [shape = 's32[1]{0}', space=sflag, size = 0x4, scoped, tag = 'scoped memory for tpu_custom_call.1']
    #allocation19 [shape = 'u8[16384]{0}', space=vmem, size = 0x4000, scoped, tag = 'output window, operand 0, single buffered']
    #allocation20 [shape = 'u8[4096]{0}', space=vmem, size = 0x1000, scoped, tag = 'output window, operand 1, single buffered']
    #allocation21 [shape = 's32[1]{0}', space=sflag, size = 0x4, scoped, tag = 'scoped memory for tpu_custom_call.1']
    %25 = vsyncpa [#allocation3], 0
    %26 = vsyncpa [#allocation6], 0
    %27 = vsyncpa [#allocation9], 0
    %28 = vsyncpa [#allocation12], 0
    %29 = vsyncpa [#allocation15], 0
    %30 = vsyncpa [#allocation18], 0
    %31 = vsyncpa [#allocation4], 0
    %32 = vsyncpa [#allocation21], 0
    // Predicated region
    $region2: #{tpu_custom_call.1} parent=1 // pred_check
      _
    $region3: #{tpu_custom_call.1} parent=1 // pred_check_branch
      %34 = sbr.rel (0) target = $region5
    $region4: #{tpu_custom_call.1} parent=1 // pred_region
      _
    $region5: #{tpu_custom_call.1} parent=1 // pred_fallthru
      _
    // Predicated region
    $region6: #{tpu_custom_call.1} parent=1 // pred_check
      _
    $region7: #{tpu_custom_call.1} parent=1 // pred_check_branch
      %36 = sbr.rel (0) target = $region9
    $region8: #{tpu_custom_call.1} parent=1 // pred_region
      %s38 = ssub.s32 16, 16
      %39 = vsyncadd [#allocation3], %s38
      %s41 = sshll.u32 [#allocation2], 4
      %s42 = int_to_ptr.vmem [resolvable:$true] %s41
      %44 = dma.hbm_to_vmem [thread:$0]  %s1, 16, %s42, [#allocation3]
    $region9: #{tpu_custom_call.1} parent=1 // pred_fallthru
      _
    // Predicated region
    $region10: #{tpu_custom_call.1} parent=1 // pred_check
      _
    $region11: #{tpu_custom_call.1} parent=1 // pred_check_branch
      %46 = sbr.rel (0) target = $region13
    $region12: #{tpu_custom_call.1} parent=1 // pred_region
      %s48 = ssub.s32 16, 16
      %49 = vsyncadd [#allocation6], %s48
      %s51 = sshll.u32 [#allocation5], 4
      %s52 = int_to_ptr.vmem [resolvable:$true] %s51
      %54 = dma.hbm_to_vmem [thread:$0]  %s2, 16, %s52, [#allocation6]
    $region13: #{tpu_custom_call.1} parent=1 // pred_fallthru
      _
    // Predicated region
    $region14: #{tpu_custom_call.1} parent=1 // pred_check
      _
    $region15: #{tpu_custom_call.1} parent=1 // pred_check_branch
      %56 = sbr.rel (0) target = $region17
    $region16: #{tpu_custom_call.1} parent=1 // pred_region
      %s58 = ssub.s32 16, 16
      %59 = vsyncadd [#allocation6], %s58
      %s61 = sshll.u32 [#allocation7], 4
      %s62 = int_to_ptr.vmem [resolvable:$true] %s61
      %64 = dma.hbm_to_vmem [thread:$0]  %s3, 16, %s62, [#allocation6]
    $region17: #{tpu_custom_call.1} parent=1 // pred_fallthru
      _
    // Predicated region
    $region18: #{tpu_custom_call.1} parent=1 // pred_check
      _
    $region19: #{tpu_custom_call.1} parent=1 // pred_check_branch
      %66 = sbr.rel (0) target = $region21
    $region20: #{tpu_custom_call.1} parent=1 // pred_region
      %s68 = ssub.s32 16, 16
      %69 = vsyncadd [#allocation9], %s68
      %s71 = sshll.u32 [#allocation8], 4
      %s72 = int_to_ptr.vmem [resolvable:$true] %s71
      %74 = dma.hbm_to_vmem [thread:$0]  %s4, 16, %s72, [#allocation9]
    $region21: #{tpu_custom_call.1} parent=1 // pred_fallthru
      _
    // Predicated region
    $region22: #{tpu_custom_call.1} parent=1 // pred_check
      _
    $region23: #{tpu_custom_call.1} parent=1 // pred_check_branch
      %76 = sbr.rel (0) target = $region25
    $region24: #{tpu_custom_call.1} parent=1 // pred_region
      %s78 = ssub.s32 16, 16
      %79 = vsyncadd [#allocation9], %s78
      %s81 = sshll.u32 [#allocation10], 4
      %s82 = int_to_ptr.vmem [resolvable:$true] %s81
      %84 = dma.hbm_to_vmem [thread:$0]  %s5, 16, %s82, [#allocation9]
    $region25: #{tpu_custom_call.1} parent=1 // pred_fallthru
      _
    // Predicated region
    $region26: #{tpu_custom_call.1} parent=1 // pred_check
      _
    $region27: #{tpu_custom_call.1} parent=1 // pred_check_branch
      %86 = sbr.rel (0) target = $region29
    $region28: #{tpu_custom_call.1} parent=1 // pred_region
      _
    $region29: #{tpu_custom_call.1} parent=1 // pred_fallthru
      _
    // Predicated region
    $region30: #{tpu_custom_call.1} parent=1 // pred_check
      _
    $region31: #{tpu_custom_call.1} parent=1 // pred_check_branch
      %88 = sbr.rel (0) target = $region33
    $region32: #{tpu_custom_call.1} parent=1 // pred_region
      %s90 = ssub.s32 16, 16
      %91 = vsyncadd [#allocation12], %s90
      %s93 = sshll.u32 [#allocation11], 4
      %s94 = int_to_ptr.vmem [resolvable:$true] %s93
      %96 = dma.hbm_to_vmem [thread:$0]  %s7, 16, %s94, [#allocation12]
    $region33: #{tpu_custom_call.1} parent=1 // pred_fallthru
      _
    // Predicated region
    $region34: #{tpu_custom_call.1} parent=1 // pred_check
      _
    $region35: #{tpu_custom_call.1} parent=1 // pred_check_branch
      %98 = sbr.rel (0) target = $region37
    $region36: #{tpu_custom_call.1} parent=1 // pred_region
      %s100 = ssub.s32 16, 16
      %101 = vsyncadd [#allocation12], %s100
      %s103 = sshll.u32 [#allocation13], 4
      %s104 = int_to_ptr.vmem [resolvable:$true] %s103
      %106 = dma.hbm_to_vmem [thread:$0]  %s8, 16, %s104, [#allocation12]
    $region37: #{tpu_custom_call.1} parent=1 // pred_fallthru
      _
    // Predicated region
    $region38: #{tpu_custom_call.1} parent=1 // pred_check
      _
    $region39: #{tpu_custom_call.1} parent=1 // pred_check_branch
      %108 = sbr.rel (0) target = $region41
    $region40: #{tpu_custom_call.1} parent=1 // pred_region
      _
    $region41: #{tpu_custom_call.1} parent=1 // pred_fallthru
      _
    // Predicated region
    $region42: #{tpu_custom_call.1} parent=1 // pred_check
      _
    $region43: #{tpu_custom_call.1} parent=1 // pred_check_branch
      %110 = sbr.rel (0) target = $region45
    $region44: #{tpu_custom_call.1} parent=1 // pred_region
      %s112 = ssub.s32 2048, 2048
      %113 = vsyncadd [#allocation15], %s112
      %s114 = sshll.u32 [#allocation14], 4
      %s115 = int_to_ptr.vmem [resolvable:$true] %s114
      %120 = dma.hbm_to_vmem [thread:$0]  %s10, 2048, %s115, [#allocation15], 128, 128, 8
    $region45: #{tpu_custom_call.1} parent=1 // pred_fallthru
      _
    // Predicated region
    $region46: #{tpu_custom_call.1} parent=1 // pred_check
      _
    $region47: #{tpu_custom_call.1} parent=1 // pred_check_branch
      %122 = sbr.rel (0) target = $region49
    $region48: #{tpu_custom_call.1} parent=1 // pred_region
      _
    $region49: #{tpu_custom_call.1} parent=1 // pred_fallthru
      _
    // Predicated region
    $region50: #{tpu_custom_call.1} parent=1 // pred_check
      _
    $region51: #{tpu_custom_call.1} parent=1 // pred_check_branch
      %124 = sbr.rel (0) target = $region53
    $region52: #{tpu_custom_call.1} parent=1 // pred_region
      _
    $region53: #{tpu_custom_call.1} parent=1 // pred_fallthru
      _
    // Predicated region
    $region54: #{tpu_custom_call.1} parent=1 // pred_check
      _
    $region55: #{tpu_custom_call.1} parent=1 // pred_check_branch
      %126 = sbr.rel (0) target = $region57
    $region56: #{tpu_custom_call.1} parent=1 // pred_region
      _
    $region57: #{tpu_custom_call.1} parent=1 // pred_fallthru
      _
    // Predicated region
    $region58: #{tpu_custom_call.1} parent=1 // pred_check
      _
    $region59: #{tpu_custom_call.1} parent=1 // pred_check_branch
      %128 = sbr.rel (0) target = $region61
    $region60: #{tpu_custom_call.1} parent=1 // pred_region
      %s130 = ssub.s32 8192, 8192
      %131 = vsyncadd [#allocation15], %s130
      %s132 = sshll.u32 [#allocation16], 4
      %s133 = int_to_ptr.vmem [resolvable:$true] %s132
      %138 = dma.hbm_to_vmem [thread:$0]  %s14, 8192, %s133, [#allocation15], 256, 256, 16
    $region61: #{tpu_custom_call.1} parent=1 // pred_fallthru
      _
    // Predicated region
    $region62: #{tpu_custom_call.1} parent=1 // pred_check
      _
    $region63: #{tpu_custom_call.1} parent=1 // pred_check_branch
      %140 = sbr.rel (0) target = $region65
    $region64: #{tpu_custom_call.1} parent=1 // pred_region
      _
    $region65: #{tpu_custom_call.1} parent=1 // pred_fallthru
      _
    // Predicated region
    $region66: #{tpu_custom_call.1} parent=1 // pred_check
      _
    $region67: #{tpu_custom_call.1} parent=1 // pred_check_branch
      %142 = sbr.rel (0) target = $region69
    $region68: #{tpu_custom_call.1} parent=1 // pred_region
      %s144 = ssub.s32 4096, 4096
      %145 = vsyncadd [#allocation18], %s144
      %s146 = sshll.u32 [#allocation17], 4
      %s147 = int_to_ptr.vmem [resolvable:$true] %s146
      %152 = dma.hbm_to_vmem [thread:$0]  %s16, 4096, %s147, [#allocation18], 64, 64, 4
    $region69: #{tpu_custom_call.1} parent=1 // pred_fallthru
      _
    // Predicated region
    $region70: #{tpu_custom_call.1} parent=1 // pred_check
      _
    $region71: #{tpu_custom_call.1} parent=1 // pred_check_branch
      %154 = sbr.rel (0) target = $region73
    $region72: #{tpu_custom_call.1} parent=1 // pred_region
      _
    $region73: #{tpu_custom_call.1} parent=1 // pred_fallthru
      _
    // Predicated region
    $region74: #{tpu_custom_call.1} parent=1 // pred_check
      _
    $region75: #{tpu_custom_call.1} parent=1 // pred_check_branch
      %156 = sbr.rel (0) target = $region77
    $region76: #{tpu_custom_call.1} parent=1 // pred_region
      %157 = dma.done [#allocation3], 16
    $region77: #{tpu_custom_call.1} parent=1 // pred_fallthru
      _
    // Predicated region
    $region78: #{tpu_custom_call.1} parent=1 // pred_check
      _
    $region79: #{tpu_custom_call.1} parent=1 // pred_check_branch
      %159 = sbr.rel (0) target = $region81
    $region80: #{tpu_custom_call.1} parent=1 // pred_region
      %160 = dma.done [#allocation6], 16
    $region81: #{tpu_custom_call.1} parent=1 // pred_fallthru
      _
    // Predicated region
    $region82: #{tpu_custom_call.1} parent=1 // pred_check
      _
    $region83: #{tpu_custom_call.1} parent=1 // pred_check_branch
      %162 = sbr.rel (0) target = $region85
    $region84: #{tpu_custom_call.1} parent=1 // pred_region
      %163 = dma.done [#allocation6], 16
    $region85: #{tpu_custom_call.1} parent=1 // pred_fallthru
      _
    // Predicated region
    $region86: #{tpu_custom_call.1} parent=1 // pred_check
      _
    $region87: #{tpu_custom_call.1} parent=1 // pred_check_branch
      %165 = sbr.rel (0) target = $region89
    $region88: #{tpu_custom_call.1} parent=1 // pred_region
      %166 = dma.done [#allocation9], 16
    $region89: #{tpu_custom_call.1} parent=1 // pred_fallthru
      _
    // Predicated region
    $region90: #{tpu_custom_call.1} parent=1 // pred_check
      _
    $region91: #{tpu_custom_call.1} parent=1 // pred_check_branch
      %168 = sbr.rel (0) target = $region93
    $region92: #{tpu_custom_call.1} parent=1 // pred_region
      %169 = dma.done [#allocation9], 16
    $region93: #{tpu_custom_call.1} parent=1 // pred_fallthru
      _
    // Predicated region
    $region94: #{tpu_custom_call.1} parent=1 // pred_check
      _
    $region95: #{tpu_custom_call.1} parent=1 // pred_check_branch
      %171 = sbr.rel (0) target = $region97
    $region96: #{tpu_custom_call.1} parent=1 // pred_region
      %172 = dma.done [#allocation12], 16
    $region97: #{tpu_custom_call.1} parent=1 // pred_fallthru
      _
    // Predicated region
    $region98: #{tpu_custom_call.1} parent=1 // pred_check
      _
    $region99: #{tpu_custom_call.1} parent=1 // pred_check_branch
      %174 = sbr.rel (0) target = $region101
    $region100: #{tpu_custom_call.1} parent=1 // pred_region
      %175 = dma.done [#allocation12], 16
    $region101: #{tpu_custom_call.1} parent=1 // pred_fallthru
      _
    // Predicated region
    $region102: #{tpu_custom_call.1} parent=1 // pred_check
      _
    $region103: #{tpu_custom_call.1} parent=1 // pred_check_branch
      %177 = sbr.rel (0) target = $region105
    $region104: #{tpu_custom_call.1} parent=1 // pred_region
      %178 = dma.done [#allocation15], 2048
    $region105: #{tpu_custom_call.1} parent=1 // pred_fallthru
      _
    // Predicated region
    $region106: #{tpu_custom_call.1} parent=1 // pred_check
      _
    $region107: #{tpu_custom_call.1} parent=1 // pred_check_branch
      %180 = sbr.rel (0) target = $region109
    $region108: #{tpu_custom_call.1} parent=1 // pred_region
      %181 = dma.done [#allocation15], 8192
    $region109: #{tpu_custom_call.1} parent=1 // pred_fallthru
      _
    // Predicated region
    $region110: #{tpu_custom_call.1} parent=1 // pred_check
      _
    $region111: #{tpu_custom_call.1} parent=1 // pred_check_branch
      %183 = sbr.rel (0) target = $region113
    $region112: #{tpu_custom_call.1} parent=1 // pred_region
      %184 = dma.done [#allocation18], 4096
    $region113: #{tpu_custom_call.1} parent=1 // pred_fallthru
      _
    %v186 = vld [vmem:[%s0] sm:$0xff]
    %v187 = vld [vmem:[#allocation2] sm:$0x1]
    %189 = vset.pattern.permute.xlu0 0
    %190 = vperm.xlu0 %189, %v186
    %v191 = vpop.permute.xlu0 %190
    %v194 = vlaneseq
    %v195 = vshrl.u32 %v194, 7
    %v196 = vsub.s32 0, %v195
    %v197 = vrot.slane %v187, %v196
    %v199 = vmul.f32 %v191, %v197
    %v200 = vld [vmem:[#allocation5] sm:$0x1]
    %201 = vset.pattern.permute.xlu0 1
    %202 = vperm.xlu0 %201, %v186
    %v203 = vpop.permute.xlu0 %202
    %v206 = vlaneseq
    %v207 = vshrl.u32 %v206, 7
    %v208 = vsub.s32 0, %v207
    %v209 = vrot.slane %v200, %v208
    %v211 = vmul.f32 %v203, %v209
    %v212 = vadd.f32 %v199, %v211
    %v213 = vld [vmem:[#allocation7] sm:$0x1]
    %v215 = vlaneseq
    %v216 = vshrl.u32 %v215, 7
    %v217 = vsub.s32 0, %v216
    %v218 = vrot.slane %v213, %v217
    %v220 = vadd.f32 %v212, %v218
    %v221 = vmax.f32 %v220, 0.0
    %vm222 = vcmask 523264
    %v223 = vsel %vm222, %v221, 0.0
    %v224 = vrot.slane %v223, 4
    %v225 = vadd.f32 %v223, %v224
    %v226 = vrot.slane %v225, 2
    %v227 = vadd.f32 %v225, %v226
    %v228 = vrot.slane %v227, 1
    %v229 = vadd.f32 %v227, %v228
    %v230 = vmul.f32 %v229, 0.125
    %v231 = vmul.f32 %v221, %v221
    %v232 = vsel %vm222, %v231, 0.0
    %v233 = vrot.slane %v232, 4
    %v234 = vadd.f32 %v232, %v233
    %v235 = vrot.slane %v234, 2
    %v236 = vadd.f32 %v234, %v235
    %v237 = vrot.slane %v236, 1
    %v238 = vadd.f32 %v236, %v237
    %v239 = vmul.f32 %v238, 0.125
    %v240 = vmul.f32 %v230, %v230
    %v241 = vsub.f32 %v239, %v240
    %v242 = vld [vmem:[#allocation8] sm:$0x1]
    %v243 = vld [vmem:[#allocation10] sm:$0x1]
    %v244 = vadd.f32 %v241, 0.8
    %v245 = vrsqrt.pop %v244
    %v246 = vmul.f32 %v242, %v245
    %v247 = vmul.f32 %v230, %v246
    %v248 = vsub.f32 %v243, %v247
    %v250 = vlaneseq
    %v251 = vshrl.u32 %v250, 7
    %v252 = vsub.s32 0, %v251
    %v253 = vrot.slane %v246, %v252
    %v255 = vmul.f32 %v221, %v253
    %v257 = vlaneseq
    %v258 = vshrl.u32 %v257, 7
    %v259 = vsub.s32 0, %v258
    %v260 = vrot.slane %v248, %v259
    %v262 = vadd.f32 %v255, %v260
    %v263 = vpack.c.bf16 %v262, %v262
    %v264 = vld [vmem:[%s6] sm:$0xf]
    %v265 = vld [vmem:[%s6 + $0x4] sm:$0xf]
    %v266 = vld [vmem:[%s6 + $0x8] sm:$0xf]
    %v267 = vld [vmem:[%s6 + $0xc] sm:$0xf]
    %v268 = vld [vmem:[%s6 + $0x10] sm:$0xf]
    %v269 = vld [vmem:[%s6 + $0x14] sm:$0xf]
    %v270 = vld [vmem:[%s6 + $0x18] sm:$0xf]
    %v271 = vld [vmem:[%s6 + $0x1c] sm:$0xf]
    %v272 = vld [vmem:[#allocation11] sm:$0x1]
    %v274 = vlaneseq
    %v275 = vshrl.u32 %v274, 7
    %v276 = vsub.s32 0, %v275
    %v277 = vrot.slane %v272, %v276
    %v287 = vunpack.c.l.b16 %v264
    %v288 = vunpack.c.l.b16 %v265
    %v289 = vunpack.c.l.b16 %v266
    %v290 = vunpack.c.l.b16 %v267
    %v291 = vunpack.c.l.b16 %v268
    %v292 = vunpack.c.l.b16 %v269
    %v293 = vunpack.c.l.b16 %v270
    %v294 = vunpack.c.l.b16 %v271
    %v295 = vpack.c.b16 %v288, %v287
    %v296 = vpack.c.b16 %v290, %v289
    %v297 = vpack.c.b16 %v292, %v291
    %v298 = vpack.c.b16 %v294, %v293
    %v304 = vsel %vm222, %v263, 0
    %306 = vmatprep.subr.bf16.mxu0 0
    %307 = vmatpush1.bf16.msra.mxu0 %v295
    %308 = vmatprep.subr.bf16.mxu0 0
    %309 = vmatpush1.bf16.msra.mxu0 %v296
    %310 = vmatprep.subr.bf16.mxu0 0
    %311 = vmatpush1.bf16.msra.mxu0 %v297
    %312 = vmatprep.subr.bf16.mxu0 0
    %313 = vmatpush1.bf16.msra.mxu0 %v298
    %314 = vmatprep.subr.bf16.mxu0 0
    %315 = vmatpush1.bf16.msra.mxu0 0
    %316 = vmatprep.subr.bf16.mxu0 0
    %317 = vmatpush1.bf16.msra.mxu0 0
    %318 = vmatprep.subr.bf16.mxu0 0
    %319 = vmatpush1.bf16.msra.mxu0 0
    %320 = vmatprep.subr.bf16.mxu0 0
    %321 = vmatpush1.bf16.msra.mxu0 0
    %322 = vmatprep.subr.bf16.mxu0 0
    %323 = vmatpush1.bf16.msra.mxu0 0
    %324 = vmatprep.subr.bf16.mxu0 0
    %325 = vmatpush1.bf16.msra.mxu0 0
    %326 = vmatprep.subr.bf16.mxu0 0
    %327 = vmatpush1.bf16.msra.mxu0 0
    %328 = vmatprep.subr.bf16.mxu0 0
    %329 = vmatpush1.bf16.msra.mxu0 0
    %330 = vmatprep.subr.bf16.mxu0 0
    %331 = vmatpush1.bf16.msra.mxu0 0
    %332 = vmatprep.subr.bf16.mxu0 0
    %333 = vmatpush1.bf16.msra.mxu0 0
    %334 = vmatprep.subr.bf16.mxu0 0
    %335 = vmatpush1.bf16.msra.mxu0 0
    %336 = vmatprep.subr.bf16.mxu0 0
    %337 = vmatpush1.bf16.msra.mxu0 0
    %338 = vmatprep.mubr.bf16.mxu0 0
    %339 = vmatmul.mubr.bf16.gmra.mrb[0].mxu0 %v304
    %v340 = vpop.f32.mrb[0].mxu0
    %v341 = vadd.f32 %v277, %v340
    %v342 = vpop.f32.mrb[0].mxu0
    %v343 = vpop.f32.mrb[0].mxu0
    %v344 = vpop.f32.mrb[0].mxu0
    %345 = vdwg.mxu0
    %v346 = vmax.f32 %v341, 0.0
    %v347 = vrot.slane %v346, 4
    %v348 = vadd.f32 %v346, %v347
    %v349 = vrot.slane %v348, 2
    %v350 = vadd.f32 %v348, %v349
    %v351 = vrot.slane %v350, 1
    %v352 = vadd.f32 %v350, %v351
    %v353 = vmul.f32 %v352, 0.125
    %v354 = vmul.f32 %v346, %v346
    %v355 = vrot.slane %v354, 4
    %v356 = vadd.f32 %v354, %v355
    %v357 = vrot.slane %v356, 2
    %v358 = vadd.f32 %v356, %v357
    %v359 = vrot.slane %v358, 1
    %v360 = vadd.f32 %v358, %v359
    %v361 = vmul.f32 %v360, 0.125
    %v362 = vmul.f32 %v353, %v353
    %v363 = vsub.f32 %v361, %v362
    %v364 = vld [vmem:[#allocation13] sm:$0x1]
    %v365 = vld [vmem:[%s9] sm:$0x1]
    %v366 = vadd.f32 %v363, 0.8
    %v367 = vrsqrt.pop %v366
    %v368 = vmul.f32 %v364, %v367
    %v369 = vmul.f32 %v353, %v368
    %v370 = vsub.f32 %v365, %v369
    %v372 = vlaneseq
    %v373 = vshrl.u32 %v372, 7
    %v374 = vsub.s32 0, %v373
    %v375 = vrot.slane %v368, %v374
    %v377 = vmul.f32 %v346, %v375
    %v379 = vlaneseq
    %v380 = vshrl.u32 %v379, 7
    %v381 = vsub.s32 0, %v380
    %v382 = vrot.slane %v370, %v381
    %v384 = vadd.f32 %v377, %v382
    %v385 = vpack.c.bf16 %v384, %v384
    %v386 = vld [vmem:[#allocation14] sm:$0xff]
    %v387 = vld [vmem:[#allocation14 + $0x8] sm:$0xff]
    %v388 = vld [vmem:[#allocation14 + $0x10] sm:$0xff]
    %v389 = vld [vmem:[#allocation14 + $0x18] sm:$0xff]
    %v390 = vld [vmem:[#allocation14 + $0x20] sm:$0xff]
    %v391 = vld [vmem:[#allocation14 + $0x28] sm:$0xff]
    %v392 = vld [vmem:[#allocation14 + $0x30] sm:$0xff]
    %v393 = vld [vmem:[#allocation14 + $0x38] sm:$0xff]
    %v394 = vld [vmem:[#allocation14 + $0x40] sm:$0xff]
    %v395 = vld [vmem:[#allocation14 + $0x48] sm:$0xff]
    %v396 = vld [vmem:[#allocation14 + $0x50] sm:$0xff]
    %v397 = vld [vmem:[#allocation14 + $0x58] sm:$0xff]
    %v398 = vld [vmem:[#allocation14 + $0x60] sm:$0xff]
    %v399 = vld [vmem:[#allocation14 + $0x68] sm:$0xff]
    %v400 = vld [vmem:[#allocation14 + $0x70] sm:$0xff]
    %v401 = vld [vmem:[#allocation14 + $0x78] sm:$0xff]
    %v402 = vld [vmem:[%s11] sm:$0x3]
    %v404 = vlaneseq
    %v405 = vshrl.u32 %v404, 7
    %v406 = vsub.s32 0, %v405
    %v407 = vrot.slane %v402, %v406
    %v408 = vlaneseq
    %v409 = vshrl.u32 %v408, 7
    %v410 = vsub.s32 1, %v409
    %v411 = vrot.slane %v402, %v410
    %v430 = vunpack.c.l.b16 %v386
    %v431 = vunpack.c.h.b16 %v386
    %v432 = vunpack.c.l.b16 %v387
    %v433 = vunpack.c.h.b16 %v387
    %v434 = vunpack.c.l.b16 %v388
    %v435 = vunpack.c.h.b16 %v388
    %v436 = vunpack.c.l.b16 %v389
    %v437 = vunpack.c.h.b16 %v389
    %v438 = vunpack.c.l.b16 %v390
    %v439 = vunpack.c.h.b16 %v390
    %v440 = vunpack.c.l.b16 %v391
    %v441 = vunpack.c.h.b16 %v391
    %v442 = vunpack.c.l.b16 %v392
    %v443 = vunpack.c.h.b16 %v392
    %v444 = vunpack.c.l.b16 %v393
    %v445 = vunpack.c.h.b16 %v393
    %v446 = vunpack.c.l.b16 %v394
    %v447 = vunpack.c.h.b16 %v394
    %v448 = vunpack.c.l.b16 %v395
    %v449 = vunpack.c.h.b16 %v395
    %v450 = vunpack.c.l.b16 %v396
    %v451 = vunpack.c.h.b16 %v396
    %v452 = vunpack.c.l.b16 %v397
    %v453 = vunpack.c.h.b16 %v397
    %v454 = vunpack.c.l.b16 %v398
    %v455 = vunpack.c.h.b16 %v398
    %v456 = vunpack.c.l.b16 %v399
    %v457 = vunpack.c.h.b16 %v399
    %v458 = vunpack.c.l.b16 %v400
    %v459 = vunpack.c.h.b16 %v400
    %v460 = vunpack.c.l.b16 %v401
    %v461 = vunpack.c.h.b16 %v401
    %v462 = vpack.c.b16 %v432, %v430
    %v463 = vpack.c.b16 %v433, %v431
    %v464 = vpack.c.b16 %v436, %v434
    %v465 = vpack.c.b16 %v437, %v435
    %v466 = vpack.c.b16 %v440, %v438
    %v467 = vpack.c.b16 %v441, %v439
    %v468 = vpack.c.b16 %v444, %v442
    %v469 = vpack.c.b16 %v445, %v443
    %v470 = vpack.c.b16 %v448, %v446
    %v471 = vpack.c.b16 %v449, %v447
    %v472 = vpack.c.b16 %v452, %v450
    %v473 = vpack.c.b16 %v453, %v451
    %v474 = vpack.c.b16 %v456, %v454
    %v475 = vpack.c.b16 %v457, %v455
    %v476 = vpack.c.b16 %v460, %v458
    %v477 = vpack.c.b16 %v461, %v459
    %494 = vmatprep.subr.bf16.mxu0 %v463
    %495 = vmatpush1.bf16.msra.mxu0 %v462
    %496 = vmatprep.subr.bf16.mxu0 %v465
    %497 = vmatpush1.bf16.msra.mxu0 %v464
    %498 = vmatprep.subr.bf16.mxu0 %v467
    %499 = vmatpush1.bf16.msra.mxu0 %v466
    %500 = vmatprep.subr.bf16.mxu0 %v469
    %501 = vmatpush1.bf16.msra.mxu0 %v468
    %502 = vmatprep.subr.bf16.mxu0 %v471
    %503 = vmatpush1.bf16.msra.mxu0 %v470
    %504 = vmatprep.subr.bf16.mxu0 %v473
    %505 = vmatpush1.bf16.msra.mxu0 %v472
    %506 = vmatprep.subr.bf16.mxu0 %v475
    %507 = vmatpush1.bf16.msra.mxu0 %v474
    %508 = vmatprep.subr.bf16.mxu0 %v477
    %509 = vmatpush1.bf16.msra.mxu0 %v476
    %510 = vmatprep.subr.bf16.mxu0 0
    %511 = vmatpush1.bf16.msra.mxu0 0
    %512 = vmatprep.subr.bf16.mxu0 0
    %513 = vmatpush1.bf16.msra.mxu0 0
    %514 = vmatprep.subr.bf16.mxu0 0
    %515 = vmatpush1.bf16.msra.mxu0 0
    %516 = vmatprep.subr.bf16.mxu0 0
    %517 = vmatpush1.bf16.msra.mxu0 0
    %518 = vmatprep.subr.bf16.mxu0 0
    %519 = vmatpush1.bf16.msra.mxu0 0
    %520 = vmatprep.subr.bf16.mxu0 0
    %521 = vmatpush1.bf16.msra.mxu0 0
    %522 = vmatprep.subr.bf16.mxu0 0
    %523 = vmatpush1.bf16.msra.mxu0 0
    %524 = vmatprep.subr.bf16.mxu0 0
    %525 = vmatpush1.bf16.msra.mxu0 0
    %526 = vmatprep.mubr.bf16.mxu0 0
    %527 = vmatmul.mubr.bf16.gmra.mrb[0].mxu0 %v385
    %v528 = vpop.f32.mrb[0].mxu0
    %v529 = vadd.f32 %v407, %v528
    %v530 = vpop.f32.mrb[0].mxu0
    %v531 = vadd.f32 %v411, %v530
    %v532 = vpop.f32.mrb[0].mxu0
    %v533 = vpop.f32.mrb[0].mxu0
    %534 = vdwg.mxu0
    %v535 = vmax.f32 %v529, 0.0
    %v536 = vmax.f32 %v531, 0.0
    %v537 = vrot.slane %v535, 4
    %v538 = vadd.f32 %v535, %v537
    %v539 = vrot.slane %v538, 2
    %v540 = vadd.f32 %v538, %v539
    %v541 = vrot.slane %v540, 1
    %v542 = vadd.f32 %v540, %v541
    %v543 = vrot.slane %v536, 4
    %v544 = vadd.f32 %v536, %v543
    %v545 = vrot.slane %v544, 2
    %v546 = vadd.f32 %v544, %v545
    %v547 = vrot.slane %v546, 1
    %v548 = vadd.f32 %v546, %v547
    %v549 = vmul.f32 %v542, 0.125
    %v550 = vmul.f32 %v548, 0.125
    %v551 = vmul.f32 %v535, %v535
    %v552 = vmul.f32 %v536, %v536
    %v553 = vrot.slane %v551, 4
    %v554 = vadd.f32 %v551, %v553
    %v555 = vrot.slane %v554, 2
    %v556 = vadd.f32 %v554, %v555
    %v557 = vrot.slane %v556, 1
    %v558 = vadd.f32 %v556, %v557
    %v559 = vrot.slane %v552, 4
    %v560 = vadd.f32 %v552, %v559
    %v561 = vrot.slane %v560, 2
    %v562 = vadd.f32 %v560, %v561
    %v563 = vrot.slane %v562, 1
    %v564 = vadd.f32 %v562, %v563
    %v565 = vmul.f32 %v558, 0.125
    %v566 = vmul.f32 %v564, 0.125
    %v567 = vmul.f32 %v549, %v549
    %v568 = vmul.f32 %v550, %v550
    %v569 = vsub.f32 %v565, %v567
    %v570 = vsub.f32 %v566, %v568
    %v571 = vld [vmem:[%s12] sm:$0x3]
    %v572 = vld [vmem:[%s13] sm:$0x3]
    %v573 = vadd.f32 %v569, 0.8
    %v574 = vadd.f32 %v570, 0.8
    %v575 = vrsqrt.pop %v573
    %v576 = vrsqrt.pop %v574
    %v579 = vcombine.low %v575, %v576
    %v581 = vunpack.c.l.s4 1966171168
    %v582 = vunpack.c.0.s8 %v581
    %v583 = vlaneseq
    %v584 = vshrl.u32 %v583, 7
    %v585 = vsub.s32 %v582, %v584
    %v586 = vrot.slane %v579, %v585
    %v588 = vunpack.c.l.s4 1966171168
    %v589 = vunpack.c.0.s8 %v588
    %v590 = vlaneseq
    %v591 = vshrl.u32 %v590, 7
    %v592 = vsub.s32 %v589, %v591
    %v593 = vrot.slane %v586, %v592
    %v595 = vmul.f32 %v571, %v593
    %v597 = vlaneseq
    %v598 = vshrl.u32 %v597, 7
    %v599 = vsub.s32 0, %v598
    %v600 = vrot.slane %v595, %v599
    %v601 = vlaneseq
    %v602 = vshrl.u32 %v601, 7
    %v603 = vsub.s32 1, %v602
    %v604 = vrot.slane %v595, %v603
    %v607 = vmul.f32 %v549, %v600
    %v608 = vmul.f32 %v550, %v604
    %v611 = vcombine.low %v607, %v608
    %v613 = vunpack.c.l.s4 1966171168
    %v614 = vunpack.c.0.s8 %v613
    %v615 = vlaneseq
    %v616 = vshrl.u32 %v615, 7
    %v617 = vsub.s32 %v614, %v616
    %v618 = vrot.slane %v611, %v617
    %v620 = vunpack.c.l.s4 1966171168
    %v621 = vunpack.c.0.s8 %v620
    %v622 = vlaneseq
    %v623 = vshrl.u32 %v622, 7
    %v624 = vsub.s32 %v621, %v623
    %v625 = vrot.slane %v618, %v624
    %v627 = vsub.f32 %v572, %v625
    %v628 = vmul.f32 %v535, %v600
    %v629 = vmul.f32 %v536, %v604
    %v631 = vlaneseq
    %v632 = vshrl.u32 %v631, 7
    %v633 = vsub.s32 0, %v632
    %v634 = vrot.slane %v627, %v633
    %v635 = vlaneseq
    %v636 = vshrl.u32 %v635, 7
    %v637 = vsub.s32 1, %v636
    %v638 = vrot.slane %v627, %v637
    %v641 = vadd.f32 %v628, %v634
    %v642 = vadd.f32 %v629, %v638
    %v643 = vpack.c.bf16 %v641, %v641
    %v644 = vpack.c.bf16 %v642, %v642
    %v645 = vld [vmem:[#allocation16] sm:$0xff]
    %v646 = vld [vmem:[#allocation16 + $0x8] sm:$0xff]
    %v647 = vld [vmem:[#allocation16 + $0x10] sm:$0xff]
    %v648 = vld [vmem:[#allocation16 + $0x18] sm:$0xff]
    %v649 = vld [vmem:[#allocation16 + $0x20] sm:$0xff]
    %v650 = vld [vmem:[#allocation16 + $0x28] sm:$0xff]
    %v651 = vld [vmem:[#allocation16 + $0x30] sm:$0xff]
    %v652 = vld [vmem:[#allocation16 + $0x38] sm:$0xff]
    %v653 = vld [vmem:[#allocation16 + $0x40] sm:$0xff]
    %v654 = vld [vmem:[#allocation16 + $0x48] sm:$0xff]
    %v655 = vld [vmem:[#allocation16 + $0x50] sm:$0xff]
    %v656 = vld [vmem:[#allocation16 + $0x58] sm:$0xff]
    %v657 = vld [vmem:[#allocation16 + $0x60] sm:$0xff]
    %v658 = vld [vmem:[#allocation16 + $0x68] sm:$0xff]
    %v659 = vld [vmem:[#allocation16 + $0x70] sm:$0xff]
    %v660 = vld [vmem:[#allocation16 + $0x78] sm:$0xff]
    %v661 = vld [vmem:[#allocation16 + $0x80] sm:$0xff]
    %v662 = vld [vmem:[#allocation16 + $0x88] sm:$0xff]
    %v663 = vld [vmem:[#allocation16 + $0x90] sm:$0xff]
    %v664 = vld [vmem:[#allocation16 + $0x98] sm:$0xff]
    %v665 = vld [vmem:[#allocation16 + $0xa0] sm:$0xff]
    %v666 = vld [vmem:[#allocation16 + $0xa8] sm:$0xff]
    %v667 = vld [vmem:[#allocation16 + $0xb0] sm:$0xff]
    %v668 = vld [vmem:[#allocation16 + $0xb8] sm:$0xff]
    %v669 = vld [vmem:[#allocation16 + $0xc0] sm:$0xff]
    %v670 = vld [vmem:[#allocation16 + $0xc8] sm:$0xff]
    %v671 = vld [vmem:[#allocation16 + $0xd0] sm:$0xff]
    %v672 = vld [vmem:[#allocation16 + $0xd8] sm:$0xff]
    %v673 = vld [vmem:[#allocation16 + $0xe0] sm:$0xff]
    %v674 = vld [vmem:[#allocation16 + $0xe8] sm:$0xff]
    %v675 = vld [vmem:[#allocation16 + $0xf0] sm:$0xff]
    %v676 = vld [vmem:[#allocation16 + $0xf8] sm:$0xff]
    %v677 = vld [vmem:[#allocation16 + $0x100] sm:$0xff]
    %v678 = vld [vmem:[#allocation16 + $0x108] sm:$0xff]
    %v679 = vld [vmem:[#allocation16 + $0x110] sm:$0xff]
    %v680 = vld [vmem:[#allocation16 + $0x118] sm:$0xff]
    %v681 = vld [vmem:[#allocation16 + $0x120] sm:$0xff]
    %v682 = vld [vmem:[#allocation16 + $0x128] sm:$0xff]
    %v683 = vld [vmem:[#allocation16 + $0x130] sm:$0xff]
    %v684 = vld [vmem:[#allocation16 + $0x138] sm:$0xff]
    %v685 = vld [vmem:[#allocation16 + $0x140] sm:$0xff]
    %v686 = vld [vmem:[#allocation16 + $0x148] sm:$0xff]
    %v687 = vld [vmem:[#allocation16 + $0x150] sm:$0xff]
    %v688 = vld [vmem:[#allocation16 + $0x158] sm:$0xff]
    %v689 = vld [vmem:[#allocation16 + $0x160] sm:$0xff]
    %v690 = vld [vmem:[#allocation16 + $0x168] sm:$0xff]
    %v691 = vld [vmem:[#allocation16 + $0x170] sm:$0xff]
    %v692 = vld [vmem:[#allocation16 + $0x178] sm:$0xff]
    %v693 = vld [vmem:[#allocation16 + $0x180] sm:$0xff]
    %v694 = vld [vmem:[#allocation16 + $0x188] sm:$0xff]
    %v695 = vld [vmem:[#allocation16 + $0x190] sm:$0xff]
    %v696 = vld [vmem:[#allocation16 + $0x198] sm:$0xff]
    %v697 = vld [vmem:[#allocation16 + $0x1a0] sm:$0xff]
    %v698 = vld [vmem:[#allocation16 + $0x1a8] sm:$0xff]
    %v699 = vld [vmem:[#allocation16 + $0x1b0] sm:$0xff]
    %v700 = vld [vmem:[#allocation16 + $0x1b8] sm:$0xff]
    %v701 = vld [vmem:[#allocation16 + $0x1c0] sm:$0xff]
    %v702 = vld [vmem:[#allocation16 + $0x1c8] sm:$0xff]
    %v703 = vld [vmem:[#allocation16 + $0x1d0] sm:$0xff]
    %v704 = vld [vmem:[#allocation16 + $0x1d8] sm:$0xff]
    %v705 = vld [vmem:[#allocation16 + $0x1e0] sm:$0xff]
    %v706 = vld [vmem:[#allocation16 + $0x1e8] sm:$0xff]
    %v707 = vld [vmem:[#allocation16 + $0x1f0] sm:$0xff]
    %v708 = vld [vmem:[#allocation16 + $0x1f8] sm:$0xff]
    %v709 = vld [vmem:[%s15] sm:$0xf]
    %v711 = vlaneseq
    %v712 = vshrl.u32 %v711, 7
    %v713 = vsub.s32 0, %v712
    %v714 = vrot.slane %v709, %v713
    %v715 = vlaneseq
    %v716 = vshrl.u32 %v715, 7
    %v717 = vsub.s32 1, %v716
    %v718 = vrot.slane %v709, %v717
    %v719 = vlaneseq
    %v720 = vshrl.u32 %v719, 7
    %v721 = vsub.s32 2, %v720
    %v722 = vrot.slane %v709, %v721
    %v723 = vlaneseq
    %v724 = vshrl.u32 %v723, 7
    %v725 = vsub.s32 3, %v724
    %v726 = vrot.slane %v709, %v725
    %v795 = vunpack.c.l.b16 %v645
    %v796 = vunpack.c.h.b16 %v645
    %v797 = vunpack.c.l.b16 %v646
    %v798 = vunpack.c.h.b16 %v646
    %v799 = vunpack.c.l.b16 %v647
    %v800 = vunpack.c.h.b16 %v647
    %v801 = vunpack.c.l.b16 %v648
    %v802 = vunpack.c.h.b16 %v648
    %v803 = vunpack.c.l.b16 %v649
    %v804 = vunpack.c.h.b16 %v649
    %v805 = vunpack.c.l.b16 %v650
    %v806 = vunpack.c.h.b16 %v650
    %v807 = vunpack.c.l.b16 %v651
    %v808 = vunpack.c.h.b16 %v651
    %v809 = vunpack.c.l.b16 %v652
    %v810 = vunpack.c.h.b16 %v652
    %v811 = vunpack.c.l.b16 %v653
    %v812 = vunpack.c.h.b16 %v653
    %v813 = vunpack.c.l.b16 %v654
    %v814 = vunpack.c.h.b16 %v654
    %v815 = vunpack.c.l.b16 %v655
    %v816 = vunpack.c.h.b16 %v655
    %v817 = vunpack.c.l.b16 %v656
    %v818 = vunpack.c.h.b16 %v656
    %v819 = vunpack.c.l.b16 %v657
    %v820 = vunpack.c.h.b16 %v657
    %v821 = vunpack.c.l.b16 %v658
    %v822 = vunpack.c.h.b16 %v658
    %v823 = vunpack.c.l.b16 %v659
    %v824 = vunpack.c.h.b16 %v659
    %v825 = vunpack.c.l.b16 %v660
    %v826 = vunpack.c.h.b16 %v660
    %v827 = vunpack.c.l.b16 %v661
    %v828 = vunpack.c.h.b16 %v661
    %v829 = vunpack.c.l.b16 %v662
    %v830 = vunpack.c.h.b16 %v662
    %v831 = vunpack.c.l.b16 %v663
    %v832 = vunpack.c.h.b16 %v663
    %v833 = vunpack.c.l.b16 %v664
    %v834 = vunpack.c.h.b16 %v664
    %v835 = vunpack.c.l.b16 %v665
    %v836 = vunpack.c.h.b16 %v665
    %v837 = vunpack.c.l.b16 %v666
    %v838 = vunpack.c.h.b16 %v666
    %v839 = vunpack.c.l.b16 %v667
    %v840 = vunpack.c.h.b16 %v667
    %v841 = vunpack.c.l.b16 %v668
    %v842 = vunpack.c.h.b16 %v668
    %v843 = vunpack.c.l.b16 %v669
    %v844 = vunpack.c.h.b16 %v669
    %v845 = vunpack.c.l.b16 %v670
    %v846 = vunpack.c.h.b16 %v670
    %v847 = vunpack.c.l.b16 %v671
    %v848 = vunpack.c.h.b16 %v671
    %v849 = vunpack.c.l.b16 %v672
    %v850 = vunpack.c.h.b16 %v672
    %v851 = vunpack.c.l.b16 %v673
    %v852 = vunpack.c.h.b16 %v673
    %v853 = vunpack.c.l.b16 %v674
    %v854 = vunpack.c.h.b16 %v674
    %v855 = vunpack.c.l.b16 %v675
    %v856 = vunpack.c.h.b16 %v675
    %v857 = vunpack.c.l.b16 %v676
    %v858 = vunpack.c.h.b16 %v676
    %v859 = vunpack.c.l.b16 %v677
    %v860 = vunpack.c.h.b16 %v677
    %v861 = vunpack.c.l.b16 %v678
    %v862 = vunpack.c.h.b16 %v678
    %v863 = vunpack.c.l.b16 %v679
    %v864 = vunpack.c.h.b16 %v679
    %v865 = vunpack.c.l.b16 %v680
    %v866 = vunpack.c.h.b16 %v680
    %v867 = vunpack.c.l.b16 %v681
    %v868 = vunpack.c.h.b16 %v681
    %v869 = vunpack.c.l.b16 %v682
    %v870 = vunpack.c.h.b16 %v682
    %v871 = vunpack.c.l.b16 %v683
    %v872 = vunpack.c.h.b16 %v683
    %v873 = vunpack.c.l.b16 %v684
    %v874 = vunpack.c.h.b16 %v684
    %v875 = vunpack.c.l.b16 %v685
    %v876 = vunpack.c.h.b16 %v685
    %v877 = vunpack.c.l.b16 %v686
    %v878 = vunpack.c.h.b16 %v686
    %v879 = vunpack.c.l.b16 %v687
    %v880 = vunpack.c.h.b16 %v687
    %v881 = vunpack.c.l.b16 %v688
    %v882 = vunpack.c.h.b16 %v688
    %v883 = vunpack.c.l.b16 %v689
    %v884 = vunpack.c.h.b16 %v689
    %v885 = vunpack.c.l.b16 %v690
    %v886 = vunpack.c.h.b16 %v690
    %v887 = vunpack.c.l.b16 %v691
    %v888 = vunpack.c.h.b16 %v691
    %v889 = vunpack.c.l.b16 %v692
    %v890 = vunpack.c.h.b16 %v692
    %v891 = vunpack.c.l.b16 %v693
    %v892 = vunpack.c.h.b16 %v693
    %v893 = vunpack.c.l.b16 %v694
    %v894 = vunpack.c.h.b16 %v694
    %v895 = vunpack.c.l.b16 %v695
    %v896 = vunpack.c.h.b16 %v695
    %v897 = vunpack.c.l.b16 %v696
    %v898 = vunpack.c.h.b16 %v696
    %v899 = vunpack.c.l.b16 %v697
    %v900 = vunpack.c.h.b16 %v697
    %v901 = vunpack.c.l.b16 %v698
    %v902 = vunpack.c.h.b16 %v698
    %v903 = vunpack.c.l.b16 %v699
    %v904 = vunpack.c.h.b16 %v699
    %v905 = vunpack.c.l.b16 %v700
    %v906 = vunpack.c.h.b16 %v700
    %v907 = vunpack.c.l.b16 %v701
    %v908 = vunpack.c.h.b16 %v701
    %v909 = vunpack.c.l.b16 %v702
    %v910 = vunpack.c.h.b16 %v702
    %v911 = vunpack.c.l.b16 %v703
    %v912 = vunpack.c.h.b16 %v703
    %v913 = vunpack.c.l.b16 %v704
    %v914 = vunpack.c.h.b16 %v704
    %v915 = vunpack.c.l.b16 %v705
    %v916 = vunpack.c.h.b16 %v705
    %v917 = vunpack.c.l.b16 %v706
    %v918 = vunpack.c.h.b16 %v706
    %v919 = vunpack.c.l.b16 %v707
    %v920 = vunpack.c.h.b16 %v707
    %v921 = vunpack.c.l.b16 %v708
    %v922 = vunpack.c.h.b16 %v708
    %v923 = vpack.c.b16 %v799, %v795
    %v924 = vpack.c.b16 %v800, %v796
    %v925 = vpack.c.b16 %v801, %v797
    %v926 = vpack.c.b16 %v802, %v798
    %v927 = vpack.c.b16 %v807, %v803
    %v928 = vpack.c.b16 %v808, %v804
    %v929 = vpack.c.b16 %v809, %v805
    %v930 = vpack.c.b16 %v810, %v806
    %v931 = vpack.c.b16 %v815, %v811
    %v932 = vpack.c.b16 %v816, %v812
    %v933 = vpack.c.b16 %v817, %v813
    %v934 = vpack.c.b16 %v818, %v814
    %v935 = vpack.c.b16 %v823, %v819
    %v936 = vpack.c.b16 %v824, %v820
    %v937 = vpack.c.b16 %v825, %v821
    %v938 = vpack.c.b16 %v826, %v822
    %v939 = vpack.c.b16 %v831, %v827
    %v940 = vpack.c.b16 %v832, %v828
    %v941 = vpack.c.b16 %v833, %v829
    %v942 = vpack.c.b16 %v834, %v830
    %v943 = vpack.c.b16 %v839, %v835
    %v944 = vpack.c.b16 %v840, %v836
    %v945 = vpack.c.b16 %v841, %v837
    %v946 = vpack.c.b16 %v842, %v838
    %v947 = vpack.c.b16 %v847, %v843
    %v948 = vpack.c.b16 %v848, %v844
    %v949 = vpack.c.b16 %v849, %v845
    %v950 = vpack.c.b16 %v850, %v846
    %v951 = vpack.c.b16 %v855, %v851
    %v952 = vpack.c.b16 %v856, %v852
    %v953 = vpack.c.b16 %v857, %v853
    %v954 = vpack.c.b16 %v858, %v854
    %v955 = vpack.c.b16 %v863, %v859
    %v956 = vpack.c.b16 %v864, %v860
    %v957 = vpack.c.b16 %v865, %v861
    %v958 = vpack.c.b16 %v866, %v862
    %v959 = vpack.c.b16 %v871, %v867
    %v960 = vpack.c.b16 %v872, %v868
    %v961 = vpack.c.b16 %v873, %v869
    %v962 = vpack.c.b16 %v874, %v870
    %v963 = vpack.c.b16 %v879, %v875
    %v964 = vpack.c.b16 %v880, %v876
    %v965 = vpack.c.b16 %v881, %v877
    %v966 = vpack.c.b16 %v882, %v878
    %v967 = vpack.c.b16 %v887, %v883
    %v968 = vpack.c.b16 %v888, %v884
    %v969 = vpack.c.b16 %v889, %v885
    %v970 = vpack.c.b16 %v890, %v886
    %v971 = vpack.c.b16 %v895, %v891
    %v972 = vpack.c.b16 %v896, %v892
    %v973 = vpack.c.b16 %v897, %v893
    %v974 = vpack.c.b16 %v898, %v894
    %v975 = vpack.c.b16 %v903, %v899
    %v976 = vpack.c.b16 %v904, %v900
    %v977 = vpack.c.b16 %v905, %v901
    %v978 = vpack.c.b16 %v906, %v902
    %v979 = vpack.c.b16 %v911, %v907
    %v980 = vpack.c.b16 %v912, %v908
    %v981 = vpack.c.b16 %v913, %v909
    %v982 = vpack.c.b16 %v914, %v910
    %v983 = vpack.c.b16 %v919, %v915
    %v984 = vpack.c.b16 %v920, %v916
    %v985 = vpack.c.b16 %v921, %v917
    %v986 = vpack.c.b16 %v922, %v918
    %1051 = vmatprep.subr.bf16.mxu0 %v924
    %1052 = vmatpush1.bf16.msra.mxu0 %v923
    %1053 = vmatprep.subr.bf16.mxu0 %v928
    %1054 = vmatpush1.bf16.msra.mxu0 %v927
    %1055 = vmatprep.subr.bf16.mxu0 %v932
    %1056 = vmatpush1.bf16.msra.mxu0 %v931
    %1057 = vmatprep.subr.bf16.mxu0 %v936
    %1058 = vmatpush1.bf16.msra.mxu0 %v935
    %1059 = vmatprep.subr.bf16.mxu0 %v940
    %1060 = vmatpush1.bf16.msra.mxu0 %v939
    %1061 = vmatprep.subr.bf16.mxu0 %v944
    %1062 = vmatpush1.bf16.msra.mxu0 %v943
    %1063 = vmatprep.subr.bf16.mxu0 %v948
    %1064 = vmatpush1.bf16.msra.mxu0 %v947
    %1065 = vmatprep.subr.bf16.mxu0 %v952
    %1066 = vmatpush1.bf16.msra.mxu0 %v951
    %1067 = vmatprep.subr.bf16.mxu0 %v956
    %1068 = vmatpush1.bf16.msra.mxu0 %v955
    %1069 = vmatprep.subr.bf16.mxu0 %v960
    %1070 = vmatpush1.bf16.msra.mxu0 %v959
    %1071 = vmatprep.subr.bf16.mxu0 %v964
    %1072 = vmatpush1.bf16.msra.mxu0 %v963
    %1073 = vmatprep.subr.bf16.mxu0 %v968
    %1074 = vmatpush1.bf16.msra.mxu0 %v967
    %1075 = vmatprep.subr.bf16.mxu0 %v972
    %1076 = vmatpush1.bf16.msra.mxu0 %v971
    %1077 = vmatprep.subr.bf16.mxu0 %v976
    %1078 = vmatpush1.bf16.msra.mxu0 %v975
    %1079 = vmatprep.subr.bf16.mxu0 %v980
    %1080 = vmatpush1.bf16.msra.mxu0 %v979
    %1081 = vmatprep.subr.bf16.mxu0 %v984
    %1082 = vmatpush1.bf16.msra.mxu0 %v983
    %1083 = vmatprep.mubr.bf16.mxu0 %v644
    %1084 = vmatmul.mubr.bf16.gmra.mrb[0].mxu0 %v643
    %v1085 = vpop.f32.mrb[0].mxu0
    %v1086 = vadd.f32 %v714, %v1085
    %v1087 = vpop.f32.mrb[0].mxu0
    %v1088 = vadd.f32 %v718, %v1087
    %v1089 = vpop.f32.mrb[0].mxu0
    %v1090 = vpop.f32.mrb[0].mxu0
    %1091 = vdwg.mxu0
    %1092 = vmatprep.subr.bf16.mxu0 %v926
    %1093 = vmatpush1.bf16.msra.mxu0 %v925
    %1094 = vmatprep.subr.bf16.mxu0 %v930
    %1095 = vmatpush1.bf16.msra.mxu0 %v929
    %1096 = vmatprep.subr.bf16.mxu0 %v934
    %1097 = vmatpush1.bf16.msra.mxu0 %v933
    %1098 = vmatprep.subr.bf16.mxu0 %v938
    %1099 = vmatpush1.bf16.msra.mxu0 %v937
    %1100 = vmatprep.subr.bf16.mxu0 %v942
    %1101 = vmatpush1.bf16.msra.mxu0 %v941
    %1102 = vmatprep.subr.bf16.mxu0 %v946
    %1103 = vmatpush1.bf16.msra.mxu0 %v945
    %1104 = vmatprep.subr.bf16.mxu0 %v950
    %1105 = vmatpush1.bf16.msra.mxu0 %v949
    %1106 = vmatprep.subr.bf16.mxu0 %v954
    %1107 = vmatpush1.bf16.msra.mxu0 %v953
    %1108 = vmatprep.subr.bf16.mxu0 %v958
    %1109 = vmatpush1.bf16.msra.mxu0 %v957
    %1110 = vmatprep.subr.bf16.mxu0 %v962
    %1111 = vmatpush1.bf16.msra.mxu0 %v961
    %1112 = vmatprep.subr.bf16.mxu0 %v966
    %1113 = vmatpush1.bf16.msra.mxu0 %v965
    %1114 = vmatprep.subr.bf16.mxu0 %v970
    %1115 = vmatpush1.bf16.msra.mxu0 %v969
    %1116 = vmatprep.subr.bf16.mxu0 %v974
    %1117 = vmatpush1.bf16.msra.mxu0 %v973
    %1118 = vmatprep.subr.bf16.mxu0 %v978
    %1119 = vmatpush1.bf16.msra.mxu0 %v977
    %1120 = vmatprep.subr.bf16.mxu0 %v982
    %1121 = vmatpush1.bf16.msra.mxu0 %v981
    %1122 = vmatprep.subr.bf16.mxu0 %v986
    %1123 = vmatpush1.bf16.msra.mxu0 %v985
    %1124 = vmatprep.mubr.bf16.mxu0 %v644
    %1125 = vmatmul.mubr.bf16.gmra.mrb[0].mxu0 %v643
    %v1126 = vpop.f32.mrb[0].mxu0
    %v1127 = vadd.f32 %v722, %v1126
    %v1128 = vpop.f32.mrb[0].mxu0
    %v1129 = vadd.f32 %v726, %v1128
    %v1130 = vpop.f32.mrb[0].mxu0
    %v1131 = vpop.f32.mrb[0].mxu0
    %1132 = vdwg.mxu0
    %v1133 = vmax.f32 %v1086, 0.0
    %v1134 = vmax.f32 %v1088, 0.0
    %v1135 = vmax.f32 %v1127, 0.0
    %v1136 = vmax.f32 %v1129, 0.0
    %1137 = vst [vmem:[#allocation19] sm:$0xff] %v1133
    %1138 = vst [vmem:[#allocation19 + $0x8] sm:$0xff] %v1134
    %1139 = vst [vmem:[#allocation19 + $0x10] sm:$0xff] %v1135
    %1140 = vst [vmem:[#allocation19 + $0x18] sm:$0xff] %v1136
    %v1141 = vpack.c.bf16 %v1133, %v1133
    %v1142 = vpack.c.bf16 %v1134, %v1134
    %v1143 = vpack.c.bf16 %v1135, %v1135
    %v1144 = vpack.c.bf16 %v1136, %v1136
    %v1145 = vld [vmem:[#allocation17] sm:$0xf]
    %v1146 = vld [vmem:[#allocation17 + $0x4] sm:$0xf]
    %v1147 = vld [vmem:[#allocation17 + $0x8] sm:$0xf]
    %v1148 = vld [vmem:[#allocation17 + $0xc] sm:$0xf]
    %v1149 = vld [vmem:[#allocation17 + $0x10] sm:$0xf]
    %v1150 = vld [vmem:[#allocation17 + $0x14] sm:$0xf]
    %v1151 = vld [vmem:[#allocation17 + $0x18] sm:$0xf]
    %v1152 = vld [vmem:[#allocation17 + $0x1c] sm:$0xf]
    %v1153 = vld [vmem:[#allocation17 + $0x20] sm:$0xf]
    %v1154 = vld [vmem:[#allocation17 + $0x24] sm:$0xf]
    %v1155 = vld [vmem:[#allocation17 + $0x28] sm:$0xf]
    %v1156 = vld [vmem:[#allocation17 + $0x2c] sm:$0xf]
    %v1157 = vld [vmem:[#allocation17 + $0x30] sm:$0xf]
    %v1158 = vld [vmem:[#allocation17 + $0x34] sm:$0xf]
    %v1159 = vld [vmem:[#allocation17 + $0x38] sm:$0xf]
    %v1160 = vld [vmem:[#allocation17 + $0x3c] sm:$0xf]
    %v1161 = vld [vmem:[#allocation17 + $0x40] sm:$0xf]
    %v1162 = vld [vmem:[#allocation17 + $0x44] sm:$0xf]
    %v1163 = vld [vmem:[#allocation17 + $0x48] sm:$0xf]
    %v1164 = vld [vmem:[#allocation17 + $0x4c] sm:$0xf]
    %v1165 = vld [vmem:[#allocation17 + $0x50] sm:$0xf]
    %v1166 = vld [vmem:[#allocation17 + $0x54] sm:$0xf]
    %v1167 = vld [vmem:[#allocation17 + $0x58] sm:$0xf]
    %v1168 = vld [vmem:[#allocation17 + $0x5c] sm:$0xf]
    %v1169 = vld [vmem:[#allocation17 + $0x60] sm:$0xf]
    %v1170 = vld [vmem:[#allocation17 + $0x64] sm:$0xf]
    %v1171 = vld [vmem:[#allocation17 + $0x68] sm:$0xf]
    %v1172 = vld [vmem:[#allocation17 + $0x6c] sm:$0xf]
    %v1173 = vld [vmem:[#allocation17 + $0x70] sm:$0xf]
    %v1174 = vld [vmem:[#allocation17 + $0x74] sm:$0xf]
    %v1175 = vld [vmem:[#allocation17 + $0x78] sm:$0xf]
    %v1176 = vld [vmem:[#allocation17 + $0x7c] sm:$0xf]
    %v1177 = vld [vmem:[#allocation17 + $0x80] sm:$0xf]
    %v1178 = vld [vmem:[#allocation17 + $0x84] sm:$0xf]
    %v1179 = vld [vmem:[#allocation17 + $0x88] sm:$0xf]
    %v1180 = vld [vmem:[#allocation17 + $0x8c] sm:$0xf]
    %v1181 = vld [vmem:[#allocation17 + $0x90] sm:$0xf]
    %v1182 = vld [vmem:[#allocation17 + $0x94] sm:$0xf]
    %v1183 = vld [vmem:[#allocation17 + $0x98] sm:$0xf]
    %v1184 = vld [vmem:[#allocation17 + $0x9c] sm:$0xf]
    %v1185 = vld [vmem:[#allocation17 + $0xa0] sm:$0xf]
    %v1186 = vld [vmem:[#allocation17 + $0xa4] sm:$0xf]
    %v1187 = vld [vmem:[#allocation17 + $0xa8] sm:$0xf]
    %v1188 = vld [vmem:[#allocation17 + $0xac] sm:$0xf]
    %v1189 = vld [vmem:[#allocation17 + $0xb0] sm:$0xf]
    %v1190 = vld [vmem:[#allocation17 + $0xb4] sm:$0xf]
    %v1191 = vld [vmem:[#allocation17 + $0xb8] sm:$0xf]
    %v1192 = vld [vmem:[#allocation17 + $0xbc] sm:$0xf]
    %v1193 = vld [vmem:[#allocation17 + $0xc0] sm:$0xf]
    %v1194 = vld [vmem:[#allocation17 + $0xc4] sm:$0xf]
    %v1195 = vld [vmem:[#allocation17 + $0xc8] sm:$0xf]
    %v1196 = vld [vmem:[#allocation17 + $0xcc] sm:$0xf]
    %v1197 = vld [vmem:[#allocation17 + $0xd0] sm:$0xf]
    %v1198 = vld [vmem:[#allocation17 + $0xd4] sm:$0xf]
    %v1199 = vld [vmem:[#allocation17 + $0xd8] sm:$0xf]
    %v1200 = vld [vmem:[#allocation17 + $0xdc] sm:$0xf]
    %v1201 = vld [vmem:[#allocation17 + $0xe0] sm:$0xf]
    %v1202 = vld [vmem:[#allocation17 + $0xe4] sm:$0xf]
    %v1203 = vld [vmem:[#allocation17 + $0xe8] sm:$0xf]
    %v1204 = vld [vmem:[#allocation17 + $0xec] sm:$0xf]
    %v1205 = vld [vmem:[#allocation17 + $0xf0] sm:$0xf]
    %v1206 = vld [vmem:[#allocation17 + $0xf4] sm:$0xf]
    %v1207 = vld [vmem:[#allocation17 + $0xf8] sm:$0xf]
    %v1208 = vld [vmem:[#allocation17 + $0xfc] sm:$0xf]
    %v1209 = vld [vmem:[%s17] sm:$0x1]
    %v1211 = vlaneseq
    %v1212 = vshrl.u32 %v1211, 7
    %v1213 = vsub.s32 0, %v1212
    %v1214 = vrot.slane %v1209, %v1213
    %v1280 = vunpack.c.l.b16 %v1145
    %v1281 = vunpack.c.l.b16 %v1146
    %v1282 = vunpack.c.l.b16 %v1147
    %v1283 = vunpack.c.l.b16 %v1148
    %v1284 = vunpack.c.l.b16 %v1149
    %v1285 = vunpack.c.l.b16 %v1150
    %v1286 = vunpack.c.l.b16 %v1151
    %v1287 = vunpack.c.l.b16 %v1152
    %v1288 = vunpack.c.l.b16 %v1153
    %v1289 = vunpack.c.l.b16 %v1154
    %v1290 = vunpack.c.l.b16 %v1155
    %v1291 = vunpack.c.l.b16 %v1156
    %v1292 = vunpack.c.l.b16 %v1157
    %v1293 = vunpack.c.l.b16 %v1158
    %v1294 = vunpack.c.l.b16 %v1159
    %v1295 = vunpack.c.l.b16 %v1160
    %v1296 = vunpack.c.l.b16 %v1161
    %v1297 = vunpack.c.l.b16 %v1162
    %v1298 = vunpack.c.l.b16 %v1163
    %v1299 = vunpack.c.l.b16 %v1164
    %v1300 = vunpack.c.l.b16 %v1165
    %v1301 = vunpack.c.l.b16 %v1166
    %v1302 = vunpack.c.l.b16 %v1167
    %v1303 = vunpack.c.l.b16 %v1168
    %v1304 = vunpack.c.l.b16 %v1169
    %v1305 = vunpack.c.l.b16 %v1170
    %v1306 = vunpack.c.l.b16 %v1171
    %v1307 = vunpack.c.l.b16 %v1172
    %v1308 = vunpack.c.l.b16 %v1173
    %v1309 = vunpack.c.l.b16 %v1174
    %v1310 = vunpack.c.l.b16 %v1175
    %v1311 = vunpack.c.l.b16 %v1176
    %v1312 = vunpack.c.l.b16 %v1177
    %v1313 = vunpack.c.l.b16 %v1178
    %v1314 = vunpack.c.l.b16 %v1179
    %v1315 = vunpack.c.l.b16 %v1180
    %v1316 = vunpack.c.l.b16 %v1181
    %v1317 = vunpack.c.l.b16 %v1182
    %v1318 = vunpack.c.l.b16 %v1183
    %v1319 = vunpack.c.l.b16 %v1184
    %v1320 = vunpack.c.l.b16 %v1185
    %v1321 = vunpack.c.l.b16 %v1186
    %v1322 = vunpack.c.l.b16 %v1187
    %v1323 = vunpack.c.l.b16 %v1188
    %v1324 = vunpack.c.l.b16 %v1189
    %v1325 = vunpack.c.l.b16 %v1190
    %v1326 = vunpack.c.l.b16 %v1191
    %v1327 = vunpack.c.l.b16 %v1192
    %v1328 = vunpack.c.l.b16 %v1193
    %v1329 = vunpack.c.l.b16 %v1194
    %v1330 = vunpack.c.l.b16 %v1195
    %v1331 = vunpack.c.l.b16 %v1196
    %v1332 = vunpack.c.l.b16 %v1197
    %v1333 = vunpack.c.l.b16 %v1198
    %v1334 = vunpack.c.l.b16 %v1199
    %v1335 = vunpack.c.l.b16 %v1200
    %v1336 = vunpack.c.l.b16 %v1201
    %v1337 = vunpack.c.l.b16 %v1202
    %v1338 = vunpack.c.l.b16 %v1203
    %v1339 = vunpack.c.l.b16 %v1204
    %v1340 = vunpack.c.l.b16 %v1205
    %v1341 = vunpack.c.l.b16 %v1206
    %v1342 = vunpack.c.l.b16 %v1207
    %v1343 = vunpack.c.l.b16 %v1208
    %v1344 = vpack.c.b16 %v1281, %v1280
    %v1345 = vpack.c.b16 %v1283, %v1282
    %v1346 = vpack.c.b16 %v1285, %v1284
    %v1347 = vpack.c.b16 %v1287, %v1286
    %v1348 = vpack.c.b16 %v1289, %v1288
    %v1349 = vpack.c.b16 %v1291, %v1290
    %v1350 = vpack.c.b16 %v1293, %v1292
    %v1351 = vpack.c.b16 %v1295, %v1294
    %v1352 = vpack.c.b16 %v1297, %v1296
    %v1353 = vpack.c.b16 %v1299, %v1298
    %v1354 = vpack.c.b16 %v1301, %v1300
    %v1355 = vpack.c.b16 %v1303, %v1302
    %v1356 = vpack.c.b16 %v1305, %v1304
    %v1357 = vpack.c.b16 %v1307, %v1306
    %v1358 = vpack.c.b16 %v1309, %v1308
    %v1359 = vpack.c.b16 %v1311, %v1310
    %v1360 = vpack.c.b16 %v1313, %v1312
    %v1361 = vpack.c.b16 %v1315, %v1314
    %v1362 = vpack.c.b16 %v1317, %v1316
    %v1363 = vpack.c.b16 %v1319, %v1318
    %v1364 = vpack.c.b16 %v1321, %v1320
    %v1365 = vpack.c.b16 %v1323, %v1322
    %v1366 = vpack.c.b16 %v1325, %v1324
    %v1367 = vpack.c.b16 %v1327, %v1326
    %v1368 = vpack.c.b16 %v1329, %v1328
    %v1369 = vpack.c.b16 %v1331, %v1330
    %v1370 = vpack.c.b16 %v1333, %v1332
    %v1371 = vpack.c.b16 %v1335, %v1334
    %v1372 = vpack.c.b16 %v1337, %v1336
    %v1373 = vpack.c.b16 %v1339, %v1338
    %v1374 = vpack.c.b16 %v1341, %v1340
    %v1375 = vpack.c.b16 %v1343, %v1342
    %1408 = vmatprep.subr.bf16.mxu0 0
    %1409 = vmatpush1.bf16.msra.mxu0 %v1344
    %1410 = vmatprep.subr.bf16.mxu0 0
    %1411 = vmatpush1.bf16.msra.mxu0 %v1345
    %1412 = vmatprep.subr.bf16.mxu0 0
    %1413 = vmatpush1.bf16.msra.mxu0 %v1346
    %1414 = vmatprep.subr.bf16.mxu0 0
    %1415 = vmatpush1.bf16.msra.mxu0 %v1347
    %1416 = vmatprep.subr.bf16.mxu0 0
    %1417 = vmatpush1.bf16.msra.mxu0 %v1348
    %1418 = vmatprep.subr.bf16.mxu0 0
    %1419 = vmatpush1.bf16.msra.mxu0 %v1349
    %1420 = vmatprep.subr.bf16.mxu0 0
    %1421 = vmatpush1.bf16.msra.mxu0 %v1350
    %1422 = vmatprep.subr.bf16.mxu0 0
    %1423 = vmatpush1.bf16.msra.mxu0 %v1351
    %1424 = vmatprep.subr.bf16.mxu0 0
    %1425 = vmatpush1.bf16.msra.mxu0 %v1352
    %1426 = vmatprep.subr.bf16.mxu0 0
    %1427 = vmatpush1.bf16.msra.mxu0 %v1353
    %1428 = vmatprep.subr.bf16.mxu0 0
    %1429 = vmatpush1.bf16.msra.mxu0 %v1354
    %1430 = vmatprep.subr.bf16.mxu0 0
    %1431 = vmatpush1.bf16.msra.mxu0 %v1355
    %1432 = vmatprep.subr.bf16.mxu0 0
    %1433 = vmatpush1.bf16.msra.mxu0 %v1356
    %1434 = vmatprep.subr.bf16.mxu0 0
    %1435 = vmatpush1.bf16.msra.mxu0 %v1357
    %1436 = vmatprep.subr.bf16.mxu0 0
    %1437 = vmatpush1.bf16.msra.mxu0 %v1358
    %1438 = vmatprep.subr.bf16.mxu0 0
    %1439 = vmatpush1.bf16.msra.mxu0 %v1359
    %1440 = vmatprep.mubr.bf16.mxu0 %v1142
    %1441 = vmatmul.mubr.bf16.gmra.mrb[0].mxu0 %v1141
    %v1442 = vpop.f32.mrb[0].mxu0
    %v1443 = vadd.f32 %v1214, %v1442
    %v1444 = vpop.f32.mrb[0].mxu0
    %v1445 = vpop.f32.mrb[0].mxu0
    %v1446 = vpop.f32.mrb[0].mxu0
    %1447 = vdwg.mxu0
    %1448 = vmatprep.subr.bf16.mxu0 0
    %1449 = vmatpush1.bf16.msra.mxu0 %v1360
    %1450 = vmatprep.subr.bf16.mxu0 0
    %1451 = vmatpush1.bf16.msra.mxu0 %v1361
    %1452 = vmatprep.subr.bf16.mxu0 0
    %1453 = vmatpush1.bf16.msra.mxu0 %v1362
    %1454 = vmatprep.subr.bf16.mxu0 0
    %1455 = vmatpush1.bf16.msra.mxu0 %v1363
    %1456 = vmatprep.subr.bf16.mxu0 0
    %1457 = vmatpush1.bf16.msra.mxu0 %v1364
    %1458 = vmatprep.subr.bf16.mxu0 0
    %1459 = vmatpush1.bf16.msra.mxu0 %v1365
    %1460 = vmatprep.subr.bf16.mxu0 0
    %1461 = vmatpush1.bf16.msra.mxu0 %v1366
    %1462 = vmatprep.subr.bf16.mxu0 0
    %1463 = vmatpush1.bf16.msra.mxu0 %v1367
    %1464 = vmatprep.subr.bf16.mxu0 0
    %1465 = vmatpush1.bf16.msra.mxu0 %v1368
    %1466 = vmatprep.subr.bf16.mxu0 0
    %1467 = vmatpush1.bf16.msra.mxu0 %v1369
    %1468 = vmatprep.subr.bf16.mxu0 0
    %1469 = vmatpush1.bf16.msra.mxu0 %v1370
    %1470 = vmatprep.subr.bf16.mxu0 0
    %1471 = vmatpush1.bf16.msra.mxu0 %v1371
    %1472 = vmatprep.subr.bf16.mxu0 0
    %1473 = vmatpush1.bf16.msra.mxu0 %v1372
    %1474 = vmatprep.subr.bf16.mxu0 0
    %1475 = vmatpush1.bf16.msra.mxu0 %v1373
    %1476 = vmatprep.subr.bf16.mxu0 0
    %1477 = vmatpush1.bf16.msra.mxu0 %v1374
    %1478 = vmatprep.subr.bf16.mxu0 0
    %1479 = vmatpush1.bf16.msra.mxu0 %v1375
    %1480 = vmatprep.mubr.bf16.mxu0 %v1144
    %1481 = vmatmul.mubr.bf16.gmra.mrb[0].mxu0 %v1143
    %v1482 = vpop.f32.mrb[0].mxu0
    %v1483 = vadd.f32 %v1443, %v1482
    %v1484 = vpop.f32.mrb[0].mxu0
    %v1485 = vpop.f32.mrb[0].mxu0
    %v1486 = vpop.f32.mrb[0].mxu0
    %1487 = vdwg.mxu0
    %v1488 = vlaneseq
    %v1489 = vand.u32 %v1488, 127
    %v1490 = vsub.f32 0.0, %v1483
    %v1491 = vmul.f32 %v1490, 1.442695
    %v1492 = vpow.pop %v1491
    %v1493 = vadd.f32 %v1492, 1.0
    %v1494 = vrcp.pop %v1493
    %v1495 = vmul.f32 1.0, %v1494
    %vm1496 = vcmp.ge.s32.totalorder %v1489, 1
    %vm1497 = vcmp.le.s32.totalorder %v1489, 10
    %vm1498 = vmand %vm1496, %vm1497
    %v1499 = vsel %vm1498, %v1483, -1e+30
    %1500 = vmax.xlane.f32.xlu0 %v1499
    %v1501 = vpop.xlane.xlu0 %1500
    %v1502 = vsub.f32 %v1499, %v1501
    %v1503 = vmul.f32 %v1502, 1.442695
    %v1504 = vpow.pop %v1503
    %1505 = vadd.xlane.f32.xlu0 %v1504
    %v1506 = vpop.xlane.xlu0 %1505
    %v1507 = vrcp.pop %v1506
    %v1508 = vmul.f32 %v1504, %v1507
    %vm1509 = vcmp.eq.s32.totalorder %v1489, 0
    %v1510 = vsel %vm1509, %v1495, %v1508
    %1511 = vst [vmem:[#allocation20] sm:$0xff] %v1510
    // Predicated region
    $region114: #{tpu_custom_call.1} parent=1 // pred_check
      _
    $region115: #{tpu_custom_call.1} parent=1 // pred_check_branch
      %1513 = sbr.rel (0) target = $region117
    $region116: #{tpu_custom_call.1} parent=1 // pred_region
      %s1515 = ssub.s32 512, 512
      %1516 = vsyncadd [#allocation4], %s1515
      %s1518 = sshll.u32 [#allocation19], 4
      %s1519 = int_to_ptr.vmem [resolvable:$true] %s1518
      %1521 = dma.vmem_to_hbm [thread:$0]  %s1519, 512, %s18, [#allocation4]
    $region117: #{tpu_custom_call.1} parent=1 // pred_fallthru
      _
    // Predicated region
    $region118: #{tpu_custom_call.1} parent=1 // pred_check
      _
    $region119: #{tpu_custom_call.1} parent=1 // pred_check_branch
      %1523 = sbr.rel (0) target = $region121
    $region120: #{tpu_custom_call.1} parent=1 // pred_region
      %s1525 = ssub.s32 128, 128
      %1526 = vsyncadd [#allocation21], %s1525
      %s1528 = sshll.u32 [#allocation20], 4
      %s1529 = int_to_ptr.vmem [resolvable:$true] %s1528
      %1531 = dma.vmem_to_hbm [thread:$0]  %s1529, 128, %s19, [#allocation21]
    $region121: #{tpu_custom_call.1} parent=1 // pred_fallthru
      _
    // Predicated region
    $region122: #{tpu_custom_call.1} parent=1 // pred_check
      _
    $region123: #{tpu_custom_call.1} parent=1 // pred_check_branch
      %1533 = sbr.rel (0) target = $region125
    $region124: #{tpu_custom_call.1} parent=1 // pred_region
      %1534 = dma.done [#allocation4], 512
    $region125: #{tpu_custom_call.1} parent=1 // pred_fallthru
      _
    // Predicated region
    $region126: #{tpu_custom_call.1} parent=1 // pred_check
      _
    $region127: #{tpu_custom_call.1} parent=1 // pred_check_branch
      %1536 = sbr.rel (0) target = $region129
    $region128: #{tpu_custom_call.1} parent=1 // pred_region
      %1537 = dma.done [#allocation21], 128
    $region129: #{tpu_custom_call.1} parent=1 // pred_fallthru
      _
    %1538 = vsyncpa [#allocation3], 1
    %1539 = vsyncpa [#allocation6], 1
    %1540 = vsyncpa [#allocation9], 1
    %1541 = vsyncpa [#allocation12], 1
    %1542 = vsyncpa [#allocation15], 1
    %1543 = vsyncpa [#allocation18], 1
    %1544 = vsyncpa [#allocation4], 1
    %1545 = vsyncpa [#allocation21], 1

</llo_original>
